<compile_context>
chip_gen: v7x
topology: tpu7x:2x2x1
jax: 0.10.0
libtpu: 0.0.40
codegen_flags: <defaults>
</compile_context>

<pallas_src>
import functools

import jax
import jax.numpy as jnp
from jax.experimental import pallas as pl
from jax.experimental.pallas import tpu as pltpu


_NEG_SLOPE = 0.05     # LeakyReLU slope used by the reference module


def _crf_fused_kernel(x_ref, w123_ref, w4_ref, aw_ref, ab_ref,
                      cw1_ref, cb1_ref, cw2_ref, cb2_ref,
                      o_ref,
                      *, H, W, C, dc, nb, k_per_stage):
    HW = H * W
    f32 = jnp.float32

    # Static column-wrap masks over the flattened spatial axis p = h*W + w:
    # left-column positions (w == 0) must be zeroed for kx == 0 taps, right-column
    # positions (w == W-1) for kx == 2 taps.  Row out-of-range is handled for
    # free by the zero fill of the lane shifts below.
    col = jax.lax.broadcasted_iota(jnp.int32, (1, HW), 1) % W
    not_left = col != 0
    not_right = col != (W - 1)

    def shift_lanes(v, s):
        """v'[..., p] = v[..., p + s], zero-filled outside [0, HW)."""
        if s == 0:
            return v
        r = v.shape[0]
        z = jnp.zeros((r, abs(s)), v.dtype)
        if s > 0:
            return jnp.concatenate([v[:, s:], z], axis=1)
        return jnp.concatenate([z, v[:, :s]], axis=1)

    def build_patch(vb):
        """vb: (C, HW) bf16 -> im2col patch (9C, HW) bf16, built in registers."""
        taps = []
        for ky in range(3):
            for kx in range(3):
                s = (ky - 1) * W + (kx - 1)
                t = shift_lanes(vb, s)
                if kx == 0:
                    t = jnp.where(not_left, t, jnp.zeros_like(t))
                elif kx == 2:
                    t = jnp.where(not_right, t, jnp.zeros_like(t))
                taps.append(t)
        return jnp.concatenate(taps, axis=0)                       # (9C, HW)

    def cond_conv(v, stage, w_cat, K, apply_act):
        """One CondConv stage.

        v: (C, HW) f32 stage input carrying the full C channels.  Stages c2-c4
        logically consume only the "remaining" channels; their conv/attention
        weights have zero columns/rows for the distilled channels, so feeding
        the full tensor is mathematically identical to the reference split.
        w_cat: (K*cout, 9*C) bf16 stacked-expert conv weight.
        """
        cout = w_cat.shape[0] // K

        # Attention: global avg pool -> 1x1 conv -> sigmoid (VPU/XLU/EUP only).
        pooled = jnp.mean(v, axis=1, keepdims=True)                # (C, 1)
        logits = jnp.sum(pooled * aw_ref[stage], axis=0, keepdims=True) + ab_ref[stage]
        att = jax.nn.sigmoid(logits)                               # (1, k_max)

        # One MXU matmul over both experts; expert combine happens afterwards,
        # so it does not sit behind the pooled->sigmoid chain.
        patch = build_patch(v.astype(jnp.bfloat16))                # (9C, HW)
        y = jnp.dot(w_cat, patch, preferred_element_type=f32)      # (K*cout, HW)

        out = att[0:1, 0:1] * y[0:cout]
        for k in range(1, K):
            out = out + att[0:1, k:k + 1] * y[k * cout:(k + 1) * cout]
        if apply_act:
            out = jnp.where(out >= 0.0, out, _NEG_SLOPE * out)     # LeakyReLU
        return out                                                 # (cout, HW)

    w_c1 = w123_ref[0]
    w_c2 = w123_ref[1]
    w_c3 = w123_ref[2]
    w_c4 = w4_ref[...]

    for n in range(nb):                                            # static unroll
        x = x_ref[n].astype(f32)                                   # (C, HW)

        out1 = cond_conv(x, 0, w_c1, k_per_stage[0], True)
        out2 = cond_conv(out1, 1, w_c2, k_per_stage[1], True)
        out3 = cond_conv(out2, 2, w_c3, k_per_stage[2], True)
        out4 = cond_conv(out3, 3, w_c4, k_per_stage[3], False)     # no act on c4

        # torch.cat([distilled_c1, distilled_c2, distilled_c3, out_c4], dim=1)
        f = jnp.concatenate([out1[:dc], out2[:dc], out3[:dc], out4], axis=0)  # (C, HW)

        # CCA: (stdv + mean over space) -> 1x1 -> ReLU -> 1x1 -> sigmoid -> scale,
        # then the module-level residual add with the original input.
        mean = jnp.mean(f, axis=1, keepdims=True)                  # (C, 1)
        var = jnp.mean((f - mean) * (f - mean), axis=1, keepdims=True)   # two-pass, /HW
        yv = jnp.sqrt(var) + mean                                  # (C, 1)
        z = jnp.maximum(
            jnp.sum(yv * cw1_ref[...], axis=0, keepdims=True) + cb1_ref[...], 0.0)   # (1, cr)
        sc = jax.nn.sigmoid(
            jnp.sum(cw2_ref[...] * z, axis=1, keepdims=True) + cb2_ref[...])          # (C, 1)

        o_ref[n] = (f * sc + x).astype(o_ref.dtype)


def _pick_samples_per_block(n):
    """Largest divisor of n that keeps >= 2 grid steps (both v7x cores busy),
    capped to bound unrolled code size."""
    if n <= 1:
        return 1
    best = 1
    for cand in range(1, min(n, 8) + 1):
        if n % cand == 0 and n // cand >= 2:
            best = cand
    return best


def crf_forward(x_nchw, params):
    """x_nchw: (N, C, H, W) float32 -> (N, C, H, W), matching CRFModule.forward."""
    N, C, H, W = x_nchw.shape
    HW = H * W
    w123, w4 = params["w123"], params["w4"]
    dc = w4.shape[0] // 2                     # distilled channels (c4 uses K=2)
    k123 = w123.shape[1] // C                 # experts in c1-c3
    assert 4 * dc == C, "CRFModule requires 4 * distilled_channels == in_channels"

    # Channels stay on the sublane axis, flattened H*W goes on lanes:
    # NCHW -> (N, C, H*W) is a pure reshape (no transpose at the boundary).
    x = x_nchw.reshape(N, C, HW)

    nb = _pick_samples_per_block(N)
    grid = (N // nb,)

    def _const_spec(arr):
        nd = arr.ndim
        return pl.BlockSpec(arr.shape, lambda b, _nd=nd: (0,) * _nd)

    operands = [x, params["w123"], params["w4"], params["att_w"], params["att_b"],
                params["cca_w1"], params["cca_b1"], params["cca_w2"], params["cca_b2"]]
    in_specs = [pl.BlockSpec((nb, C, HW), lambda b: (b, 0, 0))]
    in_specs += [_const_spec(a) for a in operands[1:]]

    kernel = functools.partial(_crf_fused_kernel, H=H, W=W, C=C, dc=dc, nb=nb,
                               k_per_stage=(k123, k123, k123, 2))

    # Only raise the scoped VMEM limit when a big tile actually needs it
    # (v6e/v5e have 128 MiB physical; v7x has 64 MiB and would need spatial
    # tiling instead of a bigger limit).
    block_bytes = nb * C * HW * 4
    w_bytes = sum(int(a.size) * a.dtype.itemsize for a in operands[1:])
    est = 4 * block_bytes + 2 * w_bytes + (8 << 20)   # in/out double-buffered + weights + headroom
    vmem_limit = None if est <= (16 << 20) else min(est, 96 << 20)

    out = pl.pallas_call(
        kernel,
        out_shape=jax.ShapeDtypeStruct((N, C, HW), x.dtype),
        grid=grid,
        in_specs=in_specs,
        out_specs=pl.BlockSpec((nb, C, HW), lambda b: (b, 0, 0)),
        compiler_params=pltpu.CompilerParams(
            dimension_semantics=("parallel",),
            vmem_limit_bytes=vmem_limit,
        ),
    )(*operands)

    return out.reshape(N, C, H, W)


# ----------------------------------------------------------------------------
# Parameter construction (deterministic, synthetic) in torch layout, converted
# into the fused kernel's stacked, channels-on-sublane layout.
# ----------------------------------------------------------------------------
def _prep_cond_conv(raw, cin_full, ch_offset, k_max):
    """Convert torch-layout CondConv params into the fused kernel's layout.

    raw["w"]     : (K, cout, cin, 3, 3)  -- torch CondConv.weight
    raw["att_w"] : (K, cin)              -- torch Attention.net (Conv2d cin->K, 1x1)
    raw["att_b"] : (K,)

    The stage's `cin` input channels are embedded at `ch_offset` inside a
    full-width `cin_full` weight (zero elsewhere) so the kernel can feed the
    full activation instead of slicing out the remaining channels.
    Returns (W_cat bf16 (K*cout, 9*cin_full), att_w (cin_full, k_max), att_b (1, k_max)).
    """
    K, cout, cin, kh, kw = raw["w"].shape
    wt = jnp.transpose(raw["w"], (0, 1, 3, 4, 2))                  # (K, cout, ky, kx, cin)
    w_full = jnp.zeros((K, cout, kh, kw, cin_full), jnp.float32)
    w_full = w_full.at[..., ch_offset:ch_offset + cin].set(wt)
    # column index = (ky*3 + kx)*cin_full + c  -- matches the kernel's patch rows.
    w_cat = w_full.reshape(K * cout, kh * kw * cin_full).astype(jnp.bfloat16)

    aw = jnp.zeros((cin_full, k_max), jnp.float32)
    aw = aw.at[ch_offset:ch_offset + cin, :K].set(jnp.transpose(raw["att_w"]))
    ab = jnp.zeros((1, k_max), jnp.float32)
    ab = ab.at[0, :K].set(raw["att_b"])
    return w_cat, aw, ab


def init_crf_params(key, in_channels, distillation_rate=0.25, kernel=2, reduction=16):
    dc = int(in_channels * distillation_rate)
    rc = in_channels - dc
    assert 4 * dc == in_channels, "residual add requires 4 * distilled == in_channels"
    cca_c = dc * 4
    cr = max(cca_c // reduction, 1)
    k_max = max(kernel, 2)
    ks = jax.random.split(key, 8)

    def cond(k, cin, cout, K):
        k1, k2, k3 = jax.random.split(k, 3)
        return {
            "w": 0.1 * jax.random.normal(k1, (K, cout, cin, 3, 3), jnp.float32),
            "att_w": 0.1 * jax.random.normal(k2, (K, cin), jnp.float32),
            "att_b": 0.1 * jax.random.normal(k3, (K,), jnp.float32),
        }

    # Reference layers:  c1: (C->C, K=kernel), c2/c3: (rc->C, K=kernel),
    # c4: (rc->dc) with the CondConv class default K=2 (the reference passes no K to c4).
    w1, aw1, ab1 = _prep_cond_conv(cond(ks[0], in_channels, in_channels, kernel), in_channels, 0, k_max)
    w2, aw2, ab2 = _prep_cond_conv(cond(ks[1], rc, in_channels, kernel), in_channels, dc, k_max)
    w3, aw3, ab3 = _prep_cond_conv(cond(ks[2], rc, in_channels, kernel), in_channels, dc, k_max)
    w4, aw4, ab4 = _prep_cond_conv(cond(ks[3], rc, dc, 2), in_channels, dc, k_max)

    params = {
        "w123": jnp.stack([w1, w2, w3]),            # (3, kernel*C, 9*C) bf16, resident
        "w4": w4,                                   # (2*dc, 9*C) bf16
        "att_w": jnp.stack([aw1, aw2, aw3, aw4]),   # (4, C, k_max)
        "att_b": jnp.stack([ab1, ab2, ab3, ab4]),   # (4, 1, k_max)
        # CCA conv_du: Conv2d(cca_c, cr, 1) -> ReLU -> Conv2d(cr, cca_c, 1) -> Sigmoid.
        # Stored pre-transposed for the channels-on-sublane layout:
        #   cca_w1[c, r] = torch_w1[r, c],  cca_w2[c, r] = torch_w2[c, r].
        "cca_w1": 0.1 * jax.random.normal(ks[4], (cca_c, cr), jnp.float32),
        "cca_b1": 0.1 * jax.random.normal(ks[5], (1, cr), jnp.float32),
        "cca_w2": 0.1 * jax.random.normal(ks[6], (cca_c, cr), jnp.float32),
        "cca_b2": 0.1 * jax.random.normal(ks[7], (cca_c, 1), jnp.float32),
    }
    # TODO(synk): self.c5 (1x1 conv) is defined in the reference __init__ but never
    # used in its forward pass, so it is intentionally omitted here.
    return params


if __name__ == "__main__":
    key = jax.random.PRNGKey(0)
    kp, kx = jax.random.split(key)

    N, C, H, W = 2, 16, 16, 16        # in_channels=16 -> dc=4, rc=12, CCA channels=16
    params = init_crf_params(kp, C)
    x = jax.random.normal(kx, (N, C, H, W), jnp.float32)

    out = jax.jit(crf_forward)(x, params)
    out = jax.block_until_ready(out)
    assert out.shape == (N, C, H, W) and out.dtype == jnp.float32
    assert bool(jnp.all(jnp.isfinite(out)))
    print("KERNEL_OK")
</pallas_src>

<mosaic_0001>
module attributes {stable_mosaic.version = 11 : i64} {
  func.func @_crf_fused_kernel(%arg0: i32, %arg1: memref<1x16x256xf32, #tpu.memory_space<vmem>>, %arg2: memref<3x32x144xbf16, #tpu.memory_space<vmem>>, %arg3: memref<8x144xbf16, #tpu.memory_space<vmem>>, %arg4: memref<4x16x2xf32, #tpu.memory_space<vmem>>, %arg5: memref<4x1x2xf32, #tpu.memory_space<vmem>>, %arg6: memref<16x1xf32, #tpu.memory_space<vmem>>, %arg7: memref<1x1xf32, #tpu.memory_space<vmem>>, %arg8: memref<16x1xf32, #tpu.memory_space<vmem>>, %arg9: memref<16x1xf32, #tpu.memory_space<vmem>>, %arg10: memref<1x16x256xf32, #tpu.memory_space<vmem>>) attributes {dimension_semantics = [#tpu.dimension_semantics<parallel>], iteration_bounds = array<i64: 2>, scalar_prefetch = 0 : i64, scratch_operands = 0 : i64, tpu.core_type = #tpu.core_type<tc>, window_params = [{transform_indices = @transform_0, window_bounds = array<i64: 1, 16, 256>}, {pipeline_mode = #tpu.pipeline_mode<synchronous>, transform_indices = @transform_1, window_bounds = array<i64: 3, 32, 144>}, {pipeline_mode = #tpu.pipeline_mode<synchronous>, transform_indices = @transform_2, window_bounds = array<i64: 8, 144>}, {pipeline_mode = #tpu.pipeline_mode<synchronous>, transform_indices = @transform_3, window_bounds = array<i64: 4, 16, 2>}, {pipeline_mode = #tpu.pipeline_mode<synchronous>, transform_indices = @transform_4, window_bounds = array<i64: 4, 1, 2>}, {pipeline_mode = #tpu.pipeline_mode<synchronous>, transform_indices = @transform_5, window_bounds = array<i64: 16, 1>}, {pipeline_mode = #tpu.pipeline_mode<synchronous>, transform_indices = @transform_6, window_bounds = array<i64: 1, 1>}, {pipeline_mode = #tpu.pipeline_mode<synchronous>, transform_indices = @transform_7, window_bounds = array<i64: 16, 1>}, {pipeline_mode = #tpu.pipeline_mode<synchronous>, transform_indices = @transform_8, window_bounds = array<i64: 16, 1>}, {transform_indices = @transform_9, window_bounds = array<i64: 1, 16, 256>}]} {
    %0 = tpu.iota {dimensions = array<i32: 1>} : vector<1x256xi32>
    %c16_i32 = arith.constant 16 : i32
    %c0_i32 = arith.constant 0 : i32
    %1 = arith.cmpi eq, %c16_i32, %c0_i32 : i32
    %c1_i32 = arith.constant 1 : i32
    %2 = arith.select %1, %c1_i32, %c16_i32 : i32
    %3 = vector.broadcast %2 : i32 to vector<1x256xi32>
    %4 = arith.remsi %0, %3 : vector<1x256xi32>
    %c0_i32_0 = arith.constant 0 : i32
    %5 = vector.broadcast %c0_i32_0 : i32 to vector<1x256xi32>
    %6 = arith.cmpi ne, %4, %5 : vector<1x256xi32>
    %c0_i32_1 = arith.constant 0 : i32
    %7 = vector.broadcast %c0_i32_1 : i32 to vector<1x256xi32>
    %8 = arith.cmpi slt, %4, %7 : vector<1x256xi32>
    %c0_i32_2 = arith.constant 0 : i32
    %9 = arith.cmpi slt, %2, %c0_i32_2 : i32
    %10 = vector.broadcast %9 : i1 to vector<1x256xi1>
    %11 = vector.broadcast %10 : vector<1x256xi1> to vector<1x256xi1>
    %12 = arith.xori %8, %11 : vector<1x256xi1>
    %13 = arith.andi %12, %6 : vector<1x256xi1>
    %14 = vector.broadcast %2 : i32 to vector<1x256xi32>
    %15 = arith.addi %4, %14 : vector<1x256xi32>
    %16 = arith.select %13, %15, %4 : vector<1x256xi1>, vector<1x256xi32>
    %c0_i32_3 = arith.constant 0 : i32
    %17 = vector.broadcast %c0_i32_3 : i32 to vector<1x256xi32>
    %18 = arith.cmpi ne, %16, %17 : vector<1x256xi32>
    %c15_i32 = arith.constant 15 : i32
    %19 = vector.broadcast %c15_i32 : i32 to vector<1x256xi32>
    %20 = arith.cmpi ne, %16, %19 : vector<1x256xi32>
    %c0 = arith.constant 0 : index
    %c0_4 = arith.constant 0 : index
    %c0_5 = arith.constant 0 : index
    %21 = vector.load %arg2[%c0, %c0_4, %c0_5] : memref<3x32x144xbf16, #tpu.memory_space<vmem>>, vector<1x32x144xbf16>
    %22 = vector.shape_cast %21 : vector<1x32x144xbf16> to vector<32x144xbf16>
    %c1 = arith.constant 1 : index
    %c0_6 = arith.constant 0 : index
    %c0_7 = arith.constant 0 : index
    %23 = vector.load %arg2[%c1, %c0_6, %c0_7] : memref<3x32x144xbf16, #tpu.memory_space<vmem>>, vector<1x32x144xbf16>
    %24 = vector.shape_cast %23 : vector<1x32x144xbf16> to vector<32x144xbf16>
    %c2 = arith.constant 2 : index
    %c0_8 = arith.constant 0 : index
    %c0_9 = arith.constant 0 : index
    %25 = vector.load %arg2[%c2, %c0_8, %c0_9] : memref<3x32x144xbf16, #tpu.memory_space<vmem>>, vector<1x32x144xbf16>
    %26 = vector.shape_cast %25 : vector<1x32x144xbf16> to vector<32x144xbf16>
    %c0_10 = arith.constant 0 : index
    %c0_11 = arith.constant 0 : index
    %27 = vector.load %arg3[%c0_10, %c0_11] : memref<8x144xbf16, #tpu.memory_space<vmem>>, vector<8x144xbf16>
    %c0_12 = arith.constant 0 : index
    %c0_13 = arith.constant 0 : index
    %c0_14 = arith.constant 0 : index
    %28 = vector.load %arg1[%c0_12, %c0_13, %c0_14] : memref<1x16x256xf32, #tpu.memory_space<vmem>>, vector<1x16x256xf32>
    %29 = vector.shape_cast %28 : vector<1x16x256xf32> to vector<16x256xf32>
    %cst = arith.constant dense<0.000000e+00> : vector<16xf32>
    %30 = vector.multi_reduction <add>, %29, %cst [1] : vector<16x256xf32> to vector<16xf32>
    %31 = vector.shape_cast %30 : vector<16xf32> to vector<16x1xf32>
    %cst_15 = arith.constant 2.560000e+02 : f32
    %32 = vector.broadcast %cst_15 : f32 to vector<16x1xf32>
    %33 = arith.divf %31, %32 : vector<16x1xf32>
    %c0_16 = arith.constant 0 : index
    %c0_17 = arith.constant 0 : index
    %c0_18 = arith.constant 0 : index
    %34 = vector.load %arg4[%c0_16, %c0_17, %c0_18] : memref<4x16x2xf32, #tpu.memory_space<vmem>>, vector<1x16x2xf32>
    %35 = vector.shape_cast %34 : vector<1x16x2xf32> to vector<16x2xf32>
    %36 = vector.broadcast %33 : vector<16x1xf32> to vector<16x2xf32>
    %37 = arith.mulf %36, %35 : vector<16x2xf32>
    %cst_19 = arith.constant dense<0.000000e+00> : vector<2xf32>
    %38 = vector.multi_reduction <add>, %37, %cst_19 [0] : vector<16x2xf32> to vector<2xf32>
    %39 = vector.shape_cast %38 : vector<2xf32> to vector<1x2xf32>
    %c0_20 = arith.constant 0 : index
    %c0_21 = arith.constant 0 : index
    %c0_22 = arith.constant 0 : index
    %40 = vector.load %arg5[%c0_20, %c0_21, %c0_22] : memref<4x1x2xf32, #tpu.memory_space<vmem>>, vector<1x1x2xf32>
    %41 = vector.shape_cast %40 : vector<1x1x2xf32> to vector<1x2xf32>
    %42 = arith.addf %39, %41 : vector<1x2xf32>
    %43 = arith.negf %42 : vector<1x2xf32>
    %44 = math.exp %43 : vector<1x2xf32>
    %cst_23 = arith.constant 1.000000e+00 : f32
    %45 = vector.broadcast %cst_23 : f32 to vector<1x2xf32>
    %46 = arith.addf %45, %44 : vector<1x2xf32>
    %47 = arith.divf %45, %46 : vector<1x2xf32>
    %48 = arith.truncf %29 : vector<16x256xf32> to vector<16x256xbf16>
    %cst_24 = arith.constant 0.000000e+00 : bf16
    %49 = vector.broadcast %cst_24 : bf16 to vector<16x17xbf16>
    %50 = vector.extract_strided_slice %48 {offsets = [0, 0], sizes = [16, 239], strides = [1, 1]} : vector<16x256xbf16> to vector<16x239xbf16>
    %51 = tpu.concatenate %49, %50 in 1 : vector<16x17xbf16>, vector<16x239xbf16> -> vector<16x256xbf16>
    %cst_25 = arith.constant 0.000000e+00 : bf16
    %52 = vector.broadcast %cst_25 : bf16 to vector<16x256xbf16>
    %53 = vector.shape_cast %18 : vector<1x256xi1> to vector<1x256xi1>
    %54 = vector.broadcast %53 : vector<1x256xi1> to vector<16x256xi1>
    %55 = arith.select %54, %51, %52 : vector<16x256xi1>, vector<16x256xbf16>
    %cst_26 = arith.constant 0.000000e+00 : bf16
    %56 = vector.broadcast %cst_26 : bf16 to vector<16x16xbf16>
    %57 = vector.extract_strided_slice %48 {offsets = [0, 0], sizes = [16, 240], strides = [1, 1]} : vector<16x256xbf16> to vector<16x240xbf16>
    %58 = tpu.concatenate %56, %57 in 1 : vector<16x16xbf16>, vector<16x240xbf16> -> vector<16x256xbf16>
    %cst_27 = arith.constant 0.000000e+00 : bf16
    %59 = vector.broadcast %cst_27 : bf16 to vector<16x15xbf16>
    %60 = vector.extract_strided_slice %48 {offsets = [0, 0], sizes = [16, 241], strides = [1, 1]} : vector<16x256xbf16> to vector<16x241xbf16>
    %61 = tpu.concatenate %59, %60 in 1 : vector<16x15xbf16>, vector<16x241xbf16> -> vector<16x256xbf16>
    %cst_28 = arith.constant 0.000000e+00 : bf16
    %62 = vector.broadcast %cst_28 : bf16 to vector<16x256xbf16>
    %63 = vector.shape_cast %20 : vector<1x256xi1> to vector<1x256xi1>
    %64 = vector.broadcast %63 : vector<1x256xi1> to vector<16x256xi1>
    %65 = arith.select %64, %61, %62 : vector<16x256xi1>, vector<16x256xbf16>
    %cst_29 = arith.constant 0.000000e+00 : bf16
    %66 = vector.broadcast %cst_29 : bf16 to vector<16x1xbf16>
    %67 = vector.extract_strided_slice %48 {offsets = [0, 0], sizes = [16, 255], strides = [1, 1]} : vector<16x256xbf16> to vector<16x255xbf16>
    %68 = tpu.concatenate %66, %67 in 1 : vector<16x1xbf16>, vector<16x255xbf16> -> vector<16x256xbf16>
    %cst_30 = arith.constant 0.000000e+00 : bf16
    %69 = vector.broadcast %cst_30 : bf16 to vector<16x256xbf16>
    %70 = vector.shape_cast %18 : vector<1x256xi1> to vector<1x256xi1>
    %71 = vector.broadcast %70 : vector<1x256xi1> to vector<16x256xi1>
    %72 = arith.select %71, %68, %69 : vector<16x256xi1>, vector<16x256xbf16>
    %cst_31 = arith.constant 0.000000e+00 : bf16
    %73 = vector.broadcast %cst_31 : bf16 to vector<16x1xbf16>
    %74 = vector.extract_strided_slice %48 {offsets = [0, 1], sizes = [16, 255], strides = [1, 1]} : vector<16x256xbf16> to vector<16x255xbf16>
    %75 = tpu.concatenate %74, %73 in 1 : vector<16x255xbf16>, vector<16x1xbf16> -> vector<16x256xbf16>
    %cst_32 = arith.constant 0.000000e+00 : bf16
    %76 = vector.broadcast %cst_32 : bf16 to vector<16x256xbf16>
    %77 = vector.shape_cast %20 : vector<1x256xi1> to vector<1x256xi1>
    %78 = vector.broadcast %77 : vector<1x256xi1> to vector<16x256xi1>
    %79 = arith.select %78, %75, %76 : vector<16x256xi1>, vector<16x256xbf16>
    %cst_33 = arith.constant 0.000000e+00 : bf16
    %80 = vector.broadcast %cst_33 : bf16 to vector<16x15xbf16>
    %81 = vector.extract_strided_slice %48 {offsets = [0, 15], sizes = [16, 241], strides = [1, 1]} : vector<16x256xbf16> to vector<16x241xbf16>
    %82 = tpu.concatenate %81, %80 in 1 : vector<16x241xbf16>, vector<16x15xbf16> -> vector<16x256xbf16>
    %cst_34 = arith.constant 0.000000e+00 : bf16
    %83 = vector.broadcast %cst_34 : bf16 to vector<16x256xbf16>
    %84 = vector.shape_cast %18 : vector<1x256xi1> to vector<1x256xi1>
    %85 = vector.broadcast %84 : vector<1x256xi1> to vector<16x256xi1>
    %86 = arith.select %85, %82, %83 : vector<16x256xi1>, vector<16x256xbf16>
    %cst_35 = arith.constant 0.000000e+00 : bf16
    %87 = vector.broadcast %cst_35 : bf16 to vector<16x16xbf16>
    %88 = vector.extract_strided_slice %48 {offsets = [0, 16], sizes = [16, 240], strides = [1, 1]} : vector<16x256xbf16> to vector<16x240xbf16>
    %89 = tpu.concatenate %88, %87 in 1 : vector<16x240xbf16>, vector<16x16xbf16> -> vector<16x256xbf16>
    %cst_36 = arith.constant 0.000000e+00 : bf16
    %90 = vector.broadcast %cst_36 : bf16 to vector<16x17xbf16>
    %91 = vector.extract_strided_slice %48 {offsets = [0, 17], sizes = [16, 239], strides = [1, 1]} : vector<16x256xbf16> to vector<16x239xbf16>
    %92 = tpu.concatenate %91, %90 in 1 : vector<16x239xbf16>, vector<16x17xbf16> -> vector<16x256xbf16>
    %cst_37 = arith.constant 0.000000e+00 : bf16
    %93 = vector.broadcast %cst_37 : bf16 to vector<16x256xbf16>
    %94 = vector.shape_cast %20 : vector<1x256xi1> to vector<1x256xi1>
    %95 = vector.broadcast %94 : vector<1x256xi1> to vector<16x256xi1>
    %96 = arith.select %95, %92, %93 : vector<16x256xi1>, vector<16x256xbf16>
    %97 = tpu.concatenate %55, %58, %65, %72, %48, %79, %86, %89, %96 in 0 : vector<16x256xbf16>, vector<16x256xbf16>, vector<16x256xbf16>, vector<16x256xbf16>, vector<16x256xbf16>, vector<16x256xbf16>, vector<16x256xbf16>, vector<16x256xbf16>, vector<16x256xbf16> -> vector<144x256xbf16>
    %cst_38 = arith.constant dense<0.000000e+00> : vector<32x256xf32>
    %98 = tpu.matmul %22, %97, %cst_38 {dimension_numbers = #tpu.dot_dimension_numbers<[1], [0], [0], [1], [0, 0, 1, 1], [], []>} : vector<32x144xbf16>, vector<144x256xbf16>, vector<32x256xf32> -> vector<32x256xf32>
    %99 = vector.extract_strided_slice %47 {offsets = [0, 0], sizes = [1, 1], strides = [1, 1]} : vector<1x2xf32> to vector<1x1xf32>
    %100 = vector.extract_strided_slice %98 {offsets = [0, 0], sizes = [16, 256], strides = [1, 1]} : vector<32x256xf32> to vector<16x256xf32>
    %101 = vector.broadcast %99 : vector<1x1xf32> to vector<16x256xf32>
    %102 = arith.mulf %101, %100 : vector<16x256xf32>
    %103 = vector.extract_strided_slice %47 {offsets = [0, 1], sizes = [1, 1], strides = [1, 1]} : vector<1x2xf32> to vector<1x1xf32>
    %104 = vector.extract_strided_slice %98 {offsets = [16, 0], sizes = [16, 256], strides = [1, 1]} : vector<32x256xf32> to vector<16x256xf32>
    %105 = vector.broadcast %103 : vector<1x1xf32> to vector<16x256xf32>
    %106 = arith.mulf %105, %104 : vector<16x256xf32>
    %107 = arith.addf %102, %106 : vector<16x256xf32>
    %cst_39 = arith.constant 0.000000e+00 : f32
    %108 = vector.broadcast %cst_39 : f32 to vector<16x256xf32>
    %109 = arith.cmpf oge, %107, %108 : vector<16x256xf32>
    %cst_40 = arith.constant 5.000000e-02 : f32
    %110 = vector.broadcast %cst_40 : f32 to vector<16x256xf32>
    %111 = arith.mulf %110, %107 : vector<16x256xf32>
    %112 = arith.select %109, %107, %111 : vector<16x256xi1>, vector<16x256xf32>
    %cst_41 = arith.constant dense<0.000000e+00> : vector<16xf32>
    %113 = vector.multi_reduction <add>, %112, %cst_41 [1] : vector<16x256xf32> to vector<16xf32>
    %114 = vector.shape_cast %113 : vector<16xf32> to vector<16x1xf32>
    %cst_42 = arith.constant 2.560000e+02 : f32
    %115 = vector.broadcast %cst_42 : f32 to vector<16x1xf32>
    %116 = arith.divf %114, %115 : vector<16x1xf32>
    %c1_43 = arith.constant 1 : index
    %c0_44 = arith.constant 0 : index
    %c0_45 = arith.constant 0 : index
    %117 = vector.load %arg4[%c1_43, %c0_44, %c0_45] : memref<4x16x2xf32, #tpu.memory_space<vmem>>, vector<1x16x2xf32>
    %118 = vector.shape_cast %117 : vector<1x16x2xf32> to vector<16x2xf32>
    %119 = vector.broadcast %116 : vector<16x1xf32> to vector<16x2xf32>
    %120 = arith.mulf %119, %118 : vector<16x2xf32>
    %cst_46 = arith.constant dense<0.000000e+00> : vector<2xf32>
    %121 = vector.multi_reduction <add>, %120, %cst_46 [0] : vector<16x2xf32> to vector<2xf32>
    %122 = vector.shape_cast %121 : vector<2xf32> to vector<1x2xf32>
    %c1_47 = arith.constant 1 : index
    %c0_48 = arith.constant 0 : index
    %c0_49 = arith.constant 0 : index
    %123 = vector.load %arg5[%c1_47, %c0_48, %c0_49] : memref<4x1x2xf32, #tpu.memory_space<vmem>>, vector<1x1x2xf32>
    %124 = vector.shape_cast %123 : vector<1x1x2xf32> to vector<1x2xf32>
    %125 = arith.addf %122, %124 : vector<1x2xf32>
    %126 = arith.negf %125 : vector<1x2xf32>
    %127 = math.exp %126 : vector<1x2xf32>
    %cst_50 = arith.constant 1.000000e+00 : f32
    %128 = vector.broadcast %cst_50 : f32 to vector<1x2xf32>
    %129 = arith.addf %128, %127 : vector<1x2xf32>
    %130 = arith.divf %128, %129 : vector<1x2xf32>
    %131 = arith.truncf %112 : vector<16x256xf32> to vector<16x256xbf16>
    %cst_51 = arith.constant 0.000000e+00 : bf16
    %132 = vector.broadcast %cst_51 : bf16 to vector<16x17xbf16>
    %133 = vector.extract_strided_slice %131 {offsets = [0, 0], sizes = [16, 239], strides = [1, 1]} : vector<16x256xbf16> to vector<16x239xbf16>
    %134 = tpu.concatenate %132, %133 in 1 : vector<16x17xbf16>, vector<16x239xbf16> -> vector<16x256xbf16>
    %cst_52 = arith.constant 0.000000e+00 : bf16
    %135 = vector.broadcast %cst_52 : bf16 to vector<16x256xbf16>
    %136 = vector.shape_cast %18 : vector<1x256xi1> to vector<1x256xi1>
    %137 = vector.broadcast %136 : vector<1x256xi1> to vector<16x256xi1>
    %138 = arith.select %137, %134, %135 : vector<16x256xi1>, vector<16x256xbf16>
    %cst_53 = arith.constant 0.000000e+00 : bf16
    %139 = vector.broadcast %cst_53 : bf16 to vector<16x16xbf16>
    %140 = vector.extract_strided_slice %131 {offsets = [0, 0], sizes = [16, 240], strides = [1, 1]} : vector<16x256xbf16> to vector<16x240xbf16>
    %141 = tpu.concatenate %139, %140 in 1 : vector<16x16xbf16>, vector<16x240xbf16> -> vector<16x256xbf16>
    %cst_54 = arith.constant 0.000000e+00 : bf16
    %142 = vector.broadcast %cst_54 : bf16 to vector<16x15xbf16>
    %143 = vector.extract_strided_slice %131 {offsets = [0, 0], sizes = [16, 241], strides = [1, 1]} : vector<16x256xbf16> to vector<16x241xbf16>
    %144 = tpu.concatenate %142, %143 in 1 : vector<16x15xbf16>, vector<16x241xbf16> -> vector<16x256xbf16>
    %cst_55 = arith.constant 0.000000e+00 : bf16
    %145 = vector.broadcast %cst_55 : bf16 to vector<16x256xbf16>
    %146 = vector.shape_cast %20 : vector<1x256xi1> to vector<1x256xi1>
    %147 = vector.broadcast %146 : vector<1x256xi1> to vector<16x256xi1>
    %148 = arith.select %147, %144, %145 : vector<16x256xi1>, vector<16x256xbf16>
    %cst_56 = arith.constant 0.000000e+00 : bf16
    %149 = vector.broadcast %cst_56 : bf16 to vector<16x1xbf16>
    %150 = vector.extract_strided_slice %131 {offsets = [0, 0], sizes = [16, 255], strides = [1, 1]} : vector<16x256xbf16> to vector<16x255xbf16>
    %151 = tpu.concatenate %149, %150 in 1 : vector<16x1xbf16>, vector<16x255xbf16> -> vector<16x256xbf16>
    %cst_57 = arith.constant 0.000000e+00 : bf16
    %152 = vector.broadcast %cst_57 : bf16 to vector<16x256xbf16>
    %153 = vector.shape_cast %18 : vector<1x256xi1> to vector<1x256xi1>
    %154 = vector.broadcast %153 : vector<1x256xi1> to vector<16x256xi1>
    %155 = arith.select %154, %151, %152 : vector<16x256xi1>, vector<16x256xbf16>
    %cst_58 = arith.constant 0.000000e+00 : bf16
    %156 = vector.broadcast %cst_58 : bf16 to vector<16x1xbf16>
    %157 = vector.extract_strided_slice %131 {offsets = [0, 1], sizes = [16, 255], strides = [1, 1]} : vector<16x256xbf16> to vector<16x255xbf16>
    %158 = tpu.concatenate %157, %156 in 1 : vector<16x255xbf16>, vector<16x1xbf16> -> vector<16x256xbf16>
    %cst_59 = arith.constant 0.000000e+00 : bf16
    %159 = vector.broadcast %cst_59 : bf16 to vector<16x256xbf16>
    %160 = vector.shape_cast %20 : vector<1x256xi1> to vector<1x256xi1>
    %161 = vector.broadcast %160 : vector<1x256xi1> to vector<16x256xi1>
    %162 = arith.select %161, %158, %159 : vector<16x256xi1>, vector<16x256xbf16>
    %cst_60 = arith.constant 0.000000e+00 : bf16
    %163 = vector.broadcast %cst_60 : bf16 to vector<16x15xbf16>
    %164 = vector.extract_strided_slice %131 {offsets = [0, 15], sizes = [16, 241], strides = [1, 1]} : vector<16x256xbf16> to vector<16x241xbf16>
    %165 = tpu.concatenate %164, %163 in 1 : vector<16x241xbf16>, vector<16x15xbf16> -> vector<16x256xbf16>
    %cst_61 = arith.constant 0.000000e+00 : bf16
    %166 = vector.broadcast %cst_61 : bf16 to vector<16x256xbf16>
    %167 = vector.shape_cast %18 : vector<1x256xi1> to vector<1x256xi1>
    %168 = vector.broadcast %167 : vector<1x256xi1> to vector<16x256xi1>
    %169 = arith.select %168, %165, %166 : vector<16x256xi1>, vector<16x256xbf16>
    %cst_62 = arith.constant 0.000000e+00 : bf16
    %170 = vector.broadcast %cst_62 : bf16 to vector<16x16xbf16>
    %171 = vector.extract_strided_slice %131 {offsets = [0, 16], sizes = [16, 240], strides = [1, 1]} : vector<16x256xbf16> to vector<16x240xbf16>
    %172 = tpu.concatenate %171, %170 in 1 : vector<16x240xbf16>, vector<16x16xbf16> -> vector<16x256xbf16>
    %cst_63 = arith.constant 0.000000e+00 : bf16
    %173 = vector.broadcast %cst_63 : bf16 to vector<16x17xbf16>
    %174 = vector.extract_strided_slice %131 {offsets = [0, 17], sizes = [16, 239], strides = [1, 1]} : vector<16x256xbf16> to vector<16x239xbf16>
    %175 = tpu.concatenate %174, %173 in 1 : vector<16x239xbf16>, vector<16x17xbf16> -> vector<16x256xbf16>
    %cst_64 = arith.constant 0.000000e+00 : bf16
    %176 = vector.broadcast %cst_64 : bf16 to vector<16x256xbf16>
    %177 = vector.shape_cast %20 : vector<1x256xi1> to vector<1x256xi1>
    %178 = vector.broadcast %177 : vector<1x256xi1> to vector<16x256xi1>
    %179 = arith.select %178, %175, %176 : vector<16x256xi1>, vector<16x256xbf16>
    %180 = tpu.concatenate %138, %141, %148, %155, %131, %162, %169, %172, %179 in 0 : vector<16x256xbf16>, vector<16x256xbf16>, vector<16x256xbf16>, vector<16x256xbf16>, vector<16x256xbf16>, vector<16x256xbf16>, vector<16x256xbf16>, vector<16x256xbf16>, vector<16x256xbf16> -> vector<144x256xbf16>
    %cst_65 = arith.constant dense<0.000000e+00> : vector<32x256xf32>
    %181 = tpu.matmul %24, %180, %cst_65 {dimension_numbers = #tpu.dot_dimension_numbers<[1], [0], [0], [1], [0, 0, 1, 1], [], []>} : vector<32x144xbf16>, vector<144x256xbf16>, vector<32x256xf32> -> vector<32x256xf32>
    %182 = vector.extract_strided_slice %130 {offsets = [0, 0], sizes = [1, 1], strides = [1, 1]} : vector<1x2xf32> to vector<1x1xf32>
    %183 = vector.extract_strided_slice %181 {offsets = [0, 0], sizes = [16, 256], strides = [1, 1]} : vector<32x256xf32> to vector<16x256xf32>
    %184 = vector.broadcast %182 : vector<1x1xf32> to vector<16x256xf32>
    %185 = arith.mulf %184, %183 : vector<16x256xf32>
    %186 = vector.extract_strided_slice %130 {offsets = [0, 1], sizes = [1, 1], strides = [1, 1]} : vector<1x2xf32> to vector<1x1xf32>
    %187 = vector.extract_strided_slice %181 {offsets = [16, 0], sizes = [16, 256], strides = [1, 1]} : vector<32x256xf32> to vector<16x256xf32>
    %188 = vector.broadcast %186 : vector<1x1xf32> to vector<16x256xf32>
    %189 = arith.mulf %188, %187 : vector<16x256xf32>
    %190 = arith.addf %185, %189 : vector<16x256xf32>
    %cst_66 = arith.constant 0.000000e+00 : f32
    %191 = vector.broadcast %cst_66 : f32 to vector<16x256xf32>
    %192 = arith.cmpf oge, %190, %191 : vector<16x256xf32>
    %cst_67 = arith.constant 5.000000e-02 : f32
    %193 = vector.broadcast %cst_67 : f32 to vector<16x256xf32>
    %194 = arith.mulf %193, %190 : vector<16x256xf32>
    %195 = arith.select %192, %190, %194 : vector<16x256xi1>, vector<16x256xf32>
    %cst_68 = arith.constant dense<0.000000e+00> : vector<16xf32>
    %196 = vector.multi_reduction <add>, %195, %cst_68 [1] : vector<16x256xf32> to vector<16xf32>
    %197 = vector.shape_cast %196 : vector<16xf32> to vector<16x1xf32>
    %cst_69 = arith.constant 2.560000e+02 : f32
    %198 = vector.broadcast %cst_69 : f32 to vector<16x1xf32>
    %199 = arith.divf %197, %198 : vector<16x1xf32>
    %c2_70 = arith.constant 2 : index
    %c0_71 = arith.constant 0 : index
    %c0_72 = arith.constant 0 : index
    %200 = vector.load %arg4[%c2_70, %c0_71, %c0_72] : memref<4x16x2xf32, #tpu.memory_space<vmem>>, vector<1x16x2xf32>
    %201 = vector.shape_cast %200 : vector<1x16x2xf32> to vector<16x2xf32>
    %202 = vector.broadcast %199 : vector<16x1xf32> to vector<16x2xf32>
    %203 = arith.mulf %202, %201 : vector<16x2xf32>
    %cst_73 = arith.constant dense<0.000000e+00> : vector<2xf32>
    %204 = vector.multi_reduction <add>, %203, %cst_73 [0] : vector<16x2xf32> to vector<2xf32>
    %205 = vector.shape_cast %204 : vector<2xf32> to vector<1x2xf32>
    %c2_74 = arith.constant 2 : index
    %c0_75 = arith.constant 0 : index
    %c0_76 = arith.constant 0 : index
    %206 = vector.load %arg5[%c2_74, %c0_75, %c0_76] : memref<4x1x2xf32, #tpu.memory_space<vmem>>, vector<1x1x2xf32>
    %207 = vector.shape_cast %206 : vector<1x1x2xf32> to vector<1x2xf32>
    %208 = arith.addf %205, %207 : vector<1x2xf32>
    %209 = arith.negf %208 : vector<1x2xf32>
    %210 = math.exp %209 : vector<1x2xf32>
    %cst_77 = arith.constant 1.000000e+00 : f32
    %211 = vector.broadcast %cst_77 : f32 to vector<1x2xf32>
    %212 = arith.addf %211, %210 : vector<1x2xf32>
    %213 = arith.divf %211, %212 : vector<1x2xf32>
    %214 = arith.truncf %195 : vector<16x256xf32> to vector<16x256xbf16>
    %cst_78 = arith.constant 0.000000e+00 : bf16
    %215 = vector.broadcast %cst_78 : bf16 to vector<16x17xbf16>
    %216 = vector.extract_strided_slice %214 {offsets = [0, 0], sizes = [16, 239], strides = [1, 1]} : vector<16x256xbf16> to vector<16x239xbf16>
    %217 = tpu.concatenate %215, %216 in 1 : vector<16x17xbf16>, vector<16x239xbf16> -> vector<16x256xbf16>
    %cst_79 = arith.constant 0.000000e+00 : bf16
    %218 = vector.broadcast %cst_79 : bf16 to vector<16x256xbf16>
    %219 = vector.shape_cast %18 : vector<1x256xi1> to vector<1x256xi1>
    %220 = vector.broadcast %219 : vector<1x256xi1> to vector<16x256xi1>
    %221 = arith.select %220, %217, %218 : vector<16x256xi1>, vector<16x256xbf16>
    %cst_80 = arith.constant 0.000000e+00 : bf16
    %222 = vector.broadcast %cst_80 : bf16 to vector<16x16xbf16>
    %223 = vector.extract_strided_slice %214 {offsets = [0, 0], sizes = [16, 240], strides = [1, 1]} : vector<16x256xbf16> to vector<16x240xbf16>
    %224 = tpu.concatenate %222, %223 in 1 : vector<16x16xbf16>, vector<16x240xbf16> -> vector<16x256xbf16>
    %cst_81 = arith.constant 0.000000e+00 : bf16
    %225 = vector.broadcast %cst_81 : bf16 to vector<16x15xbf16>
    %226 = vector.extract_strided_slice %214 {offsets = [0, 0], sizes = [16, 241], strides = [1, 1]} : vector<16x256xbf16> to vector<16x241xbf16>
    %227 = tpu.concatenate %225, %226 in 1 : vector<16x15xbf16>, vector<16x241xbf16> -> vector<16x256xbf16>
    %cst_82 = arith.constant 0.000000e+00 : bf16
    %228 = vector.broadcast %cst_82 : bf16 to vector<16x256xbf16>
    %229 = vector.shape_cast %20 : vector<1x256xi1> to vector<1x256xi1>
    %230 = vector.broadcast %229 : vector<1x256xi1> to vector<16x256xi1>
    %231 = arith.select %230, %227, %228 : vector<16x256xi1>, vector<16x256xbf16>
    %cst_83 = arith.constant 0.000000e+00 : bf16
    %232 = vector.broadcast %cst_83 : bf16 to vector<16x1xbf16>
    %233 = vector.extract_strided_slice %214 {offsets = [0, 0], sizes = [16, 255], strides = [1, 1]} : vector<16x256xbf16> to vector<16x255xbf16>
    %234 = tpu.concatenate %232, %233 in 1 : vector<16x1xbf16>, vector<16x255xbf16> -> vector<16x256xbf16>
    %cst_84 = arith.constant 0.000000e+00 : bf16
    %235 = vector.broadcast %cst_84 : bf16 to vector<16x256xbf16>
    %236 = vector.shape_cast %18 : vector<1x256xi1> to vector<1x256xi1>
    %237 = vector.broadcast %236 : vector<1x256xi1> to vector<16x256xi1>
    %238 = arith.select %237, %234, %235 : vector<16x256xi1>, vector<16x256xbf16>
    %cst_85 = arith.constant 0.000000e+00 : bf16
    %239 = vector.broadcast %cst_85 : bf16 to vector<16x1xbf16>
    %240 = vector.extract_strided_slice %214 {offsets = [0, 1], sizes = [16, 255], strides = [1, 1]} : vector<16x256xbf16> to vector<16x255xbf16>
    %241 = tpu.concatenate %240, %239 in 1 : vector<16x255xbf16>, vector<16x1xbf16> -> vector<16x256xbf16>
    %cst_86 = arith.constant 0.000000e+00 : bf16
    %242 = vector.broadcast %cst_86 : bf16 to vector<16x256xbf16>
    %243 = vector.shape_cast %20 : vector<1x256xi1> to vector<1x256xi1>
    %244 = vector.broadcast %243 : vector<1x256xi1> to vector<16x256xi1>
    %245 = arith.select %244, %241, %242 : vector<16x256xi1>, vector<16x256xbf16>
    %cst_87 = arith.constant 0.000000e+00 : bf16
    %246 = vector.broadcast %cst_87 : bf16 to vector<16x15xbf16>
    %247 = vector.extract_strided_slice %214 {offsets = [0, 15], sizes = [16, 241], strides = [1, 1]} : vector<16x256xbf16> to vector<16x241xbf16>
    %248 = tpu.concatenate %247, %246 in 1 : vector<16x241xbf16>, vector<16x15xbf16> -> vector<16x256xbf16>
    %cst_88 = arith.constant 0.000000e+00 : bf16
    %249 = vector.broadcast %cst_88 : bf16 to vector<16x256xbf16>
    %250 = vector.shape_cast %18 : vector<1x256xi1> to vector<1x256xi1>
    %251 = vector.broadcast %250 : vector<1x256xi1> to vector<16x256xi1>
    %252 = arith.select %251, %248, %249 : vector<16x256xi1>, vector<16x256xbf16>
    %cst_89 = arith.constant 0.000000e+00 : bf16
    %253 = vector.broadcast %cst_89 : bf16 to vector<16x16xbf16>
    %254 = vector.extract_strided_slice %214 {offsets = [0, 16], sizes = [16, 240], strides = [1, 1]} : vector<16x256xbf16> to vector<16x240xbf16>
    %255 = tpu.concatenate %254, %253 in 1 : vector<16x240xbf16>, vector<16x16xbf16> -> vector<16x256xbf16>
    %cst_90 = arith.constant 0.000000e+00 : bf16
    %256 = vector.broadcast %cst_90 : bf16 to vector<16x17xbf16>
    %257 = vector.extract_strided_slice %214 {offsets = [0, 17], sizes = [16, 239], strides = [1, 1]} : vector<16x256xbf16> to vector<16x239xbf16>
    %258 = tpu.concatenate %257, %256 in 1 : vector<16x239xbf16>, vector<16x17xbf16> -> vector<16x256xbf16>
    %cst_91 = arith.constant 0.000000e+00 : bf16
    %259 = vector.broadcast %cst_91 : bf16 to vector<16x256xbf16>
    %260 = vector.shape_cast %20 : vector<1x256xi1> to vector<1x256xi1>
    %261 = vector.broadcast %260 : vector<1x256xi1> to vector<16x256xi1>
    %262 = arith.select %261, %258, %259 : vector<16x256xi1>, vector<16x256xbf16>
    %263 = tpu.concatenate %221, %224, %231, %238, %214, %245, %252, %255, %262 in 0 : vector<16x256xbf16>, vector<16x256xbf16>, vector<16x256xbf16>, vector<16x256xbf16>, vector<16x256xbf16>, vector<16x256xbf16>, vector<16x256xbf16>, vector<16x256xbf16>, vector<16x256xbf16> -> vector<144x256xbf16>
    %cst_92 = arith.constant dense<0.000000e+00> : vector<32x256xf32>
    %264 = tpu.matmul %26, %263, %cst_92 {dimension_numbers = #tpu.dot_dimension_numbers<[1], [0], [0], [1], [0, 0, 1, 1], [], []>} : vector<32x144xbf16>, vector<144x256xbf16>, vector<32x256xf32> -> vector<32x256xf32>
    %265 = vector.extract_strided_slice %213 {offsets = [0, 0], sizes = [1, 1], strides = [1, 1]} : vector<1x2xf32> to vector<1x1xf32>
    %266 = vector.extract_strided_slice %264 {offsets = [0, 0], sizes = [16, 256], strides = [1, 1]} : vector<32x256xf32> to vector<16x256xf32>
    %267 = vector.broadcast %265 : vector<1x1xf32> to vector<16x256xf32>
    %268 = arith.mulf %267, %266 : vector<16x256xf32>
    %269 = vector.extract_strided_slice %213 {offsets = [0, 1], sizes = [1, 1], strides = [1, 1]} : vector<1x2xf32> to vector<1x1xf32>
    %270 = vector.extract_strided_slice %264 {offsets = [16, 0], sizes = [16, 256], strides = [1, 1]} : vector<32x256xf32> to vector<16x256xf32>
    %271 = vector.broadcast %269 : vector<1x1xf32> to vector<16x256xf32>
    %272 = arith.mulf %271, %270 : vector<16x256xf32>
    %273 = arith.addf %268, %272 : vector<16x256xf32>
    %cst_93 = arith.constant 0.000000e+00 : f32
    %274 = vector.broadcast %cst_93 : f32 to vector<16x256xf32>
    %275 = arith.cmpf oge, %273, %274 : vector<16x256xf32>
    %cst_94 = arith.constant 5.000000e-02 : f32
    %276 = vector.broadcast %cst_94 : f32 to vector<16x256xf32>
    %277 = arith.mulf %276, %273 : vector<16x256xf32>
    %278 = arith.select %275, %273, %277 : vector<16x256xi1>, vector<16x256xf32>
    %cst_95 = arith.constant dense<0.000000e+00> : vector<16xf32>
    %279 = vector.multi_reduction <add>, %278, %cst_95 [1] : vector<16x256xf32> to vector<16xf32>
    %280 = vector.shape_cast %279 : vector<16xf32> to vector<16x1xf32>
    %cst_96 = arith.constant 2.560000e+02 : f32
    %281 = vector.broadcast %cst_96 : f32 to vector<16x1xf32>
    %282 = arith.divf %280, %281 : vector<16x1xf32>
    %c3 = arith.constant 3 : index
    %c0_97 = arith.constant 0 : index
    %c0_98 = arith.constant 0 : index
    %283 = vector.load %arg4[%c3, %c0_97, %c0_98] : memref<4x16x2xf32, #tpu.memory_space<vmem>>, vector<1x16x2xf32>
    %284 = vector.shape_cast %283 : vector<1x16x2xf32> to vector<16x2xf32>
    %285 = vector.broadcast %282 : vector<16x1xf32> to vector<16x2xf32>
    %286 = arith.mulf %285, %284 : vector<16x2xf32>
    %cst_99 = arith.constant dense<0.000000e+00> : vector<2xf32>
    %287 = vector.multi_reduction <add>, %286, %cst_99 [0] : vector<16x2xf32> to vector<2xf32>
    %288 = vector.shape_cast %287 : vector<2xf32> to vector<1x2xf32>
    %c3_100 = arith.constant 3 : index
    %c0_101 = arith.constant 0 : index
    %c0_102 = arith.constant 0 : index
    %289 = vector.load %arg5[%c3_100, %c0_101, %c0_102] : memref<4x1x2xf32, #tpu.memory_space<vmem>>, vector<1x1x2xf32>
    %290 = vector.shape_cast %289 : vector<1x1x2xf32> to vector<1x2xf32>
    %291 = arith.addf %288, %290 : vector<1x2xf32>
    %292 = arith.negf %291 : vector<1x2xf32>
    %293 = math.exp %292 : vector<1x2xf32>
    %cst_103 = arith.constant 1.000000e+00 : f32
    %294 = vector.broadcast %cst_103 : f32 to vector<1x2xf32>
    %295 = arith.addf %294, %293 : vector<1x2xf32>
    %296 = arith.divf %294, %295 : vector<1x2xf32>
    %297 = arith.truncf %278 : vector<16x256xf32> to vector<16x256xbf16>
    %cst_104 = arith.constant 0.000000e+00 : bf16
    %298 = vector.broadcast %cst_104 : bf16 to vector<16x17xbf16>
    %299 = vector.extract_strided_slice %297 {offsets = [0, 0], sizes = [16, 239], strides = [1, 1]} : vector<16x256xbf16> to vector<16x239xbf16>
    %300 = tpu.concatenate %298, %299 in 1 : vector<16x17xbf16>, vector<16x239xbf16> -> vector<16x256xbf16>
    %cst_105 = arith.constant 0.000000e+00 : bf16
    %301 = vector.broadcast %cst_105 : bf16 to vector<16x256xbf16>
    %302 = vector.shape_cast %18 : vector<1x256xi1> to vector<1x256xi1>
    %303 = vector.broadcast %302 : vector<1x256xi1> to vector<16x256xi1>
    %304 = arith.select %303, %300, %301 : vector<16x256xi1>, vector<16x256xbf16>
    %cst_106 = arith.constant 0.000000e+00 : bf16
    %305 = vector.broadcast %cst_106 : bf16 to vector<16x16xbf16>
    %306 = vector.extract_strided_slice %297 {offsets = [0, 0], sizes = [16, 240], strides = [1, 1]} : vector<16x256xbf16> to vector<16x240xbf16>
    %307 = tpu.concatenate %305, %306 in 1 : vector<16x16xbf16>, vector<16x240xbf16> -> vector<16x256xbf16>
    %cst_107 = arith.constant 0.000000e+00 : bf16
    %308 = vector.broadcast %cst_107 : bf16 to vector<16x15xbf16>
    %309 = vector.extract_strided_slice %297 {offsets = [0, 0], sizes = [16, 241], strides = [1, 1]} : vector<16x256xbf16> to vector<16x241xbf16>
    %310 = tpu.concatenate %308, %309 in 1 : vector<16x15xbf16>, vector<16x241xbf16> -> vector<16x256xbf16>
    %cst_108 = arith.constant 0.000000e+00 : bf16
    %311 = vector.broadcast %cst_108 : bf16 to vector<16x256xbf16>
    %312 = vector.shape_cast %20 : vector<1x256xi1> to vector<1x256xi1>
    %313 = vector.broadcast %312 : vector<1x256xi1> to vector<16x256xi1>
    %314 = arith.select %313, %310, %311 : vector<16x256xi1>, vector<16x256xbf16>
    %cst_109 = arith.constant 0.000000e+00 : bf16
    %315 = vector.broadcast %cst_109 : bf16 to vector<16x1xbf16>
    %316 = vector.extract_strided_slice %297 {offsets = [0, 0], sizes = [16, 255], strides = [1, 1]} : vector<16x256xbf16> to vector<16x255xbf16>
    %317 = tpu.concatenate %315, %316 in 1 : vector<16x1xbf16>, vector<16x255xbf16> -> vector<16x256xbf16>
    %cst_110 = arith.constant 0.000000e+00 : bf16
    %318 = vector.broadcast %cst_110 : bf16 to vector<16x256xbf16>
    %319 = vector.shape_cast %18 : vector<1x256xi1> to vector<1x256xi1>
    %320 = vector.broadcast %319 : vector<1x256xi1> to vector<16x256xi1>
    %321 = arith.select %320, %317, %318 : vector<16x256xi1>, vector<16x256xbf16>
    %cst_111 = arith.constant 0.000000e+00 : bf16
    %322 = vector.broadcast %cst_111 : bf16 to vector<16x1xbf16>
    %323 = vector.extract_strided_slice %297 {offsets = [0, 1], sizes = [16, 255], strides = [1, 1]} : vector<16x256xbf16> to vector<16x255xbf16>
    %324 = tpu.concatenate %323, %322 in 1 : vector<16x255xbf16>, vector<16x1xbf16> -> vector<16x256xbf16>
    %cst_112 = arith.constant 0.000000e+00 : bf16
    %325 = vector.broadcast %cst_112 : bf16 to vector<16x256xbf16>
    %326 = vector.shape_cast %20 : vector<1x256xi1> to vector<1x256xi1>
    %327 = vector.broadcast %326 : vector<1x256xi1> to vector<16x256xi1>
    %328 = arith.select %327, %324, %325 : vector<16x256xi1>, vector<16x256xbf16>
    %cst_113 = arith.constant 0.000000e+00 : bf16
    %329 = vector.broadcast %cst_113 : bf16 to vector<16x15xbf16>
    %330 = vector.extract_strided_slice %297 {offsets = [0, 15], sizes = [16, 241], strides = [1, 1]} : vector<16x256xbf16> to vector<16x241xbf16>
    %331 = tpu.concatenate %330, %329 in 1 : vector<16x241xbf16>, vector<16x15xbf16> -> vector<16x256xbf16>
    %cst_114 = arith.constant 0.000000e+00 : bf16
    %332 = vector.broadcast %cst_114 : bf16 to vector<16x256xbf16>
    %333 = vector.shape_cast %18 : vector<1x256xi1> to vector<1x256xi1>
    %334 = vector.broadcast %333 : vector<1x256xi1> to vector<16x256xi1>
    %335 = arith.select %334, %331, %332 : vector<16x256xi1>, vector<16x256xbf16>
    %cst_115 = arith.constant 0.000000e+00 : bf16
    %336 = vector.broadcast %cst_115 : bf16 to vector<16x16xbf16>
    %337 = vector.extract_strided_slice %297 {offsets = [0, 16], sizes = [16, 240], strides = [1, 1]} : vector<16x256xbf16> to vector<16x240xbf16>
    %338 = tpu.concatenate %337, %336 in 1 : vector<16x240xbf16>, vector<16x16xbf16> -> vector<16x256xbf16>
    %cst_116 = arith.constant 0.000000e+00 : bf16
    %339 = vector.broadcast %cst_116 : bf16 to vector<16x17xbf16>
    %340 = vector.extract_strided_slice %297 {offsets = [0, 17], sizes = [16, 239], strides = [1, 1]} : vector<16x256xbf16> to vector<16x239xbf16>
    %341 = tpu.concatenate %340, %339 in 1 : vector<16x239xbf16>, vector<16x17xbf16> -> vector<16x256xbf16>
    %cst_117 = arith.constant 0.000000e+00 : bf16
    %342 = vector.broadcast %cst_117 : bf16 to vector<16x256xbf16>
    %343 = vector.shape_cast %20 : vector<1x256xi1> to vector<1x256xi1>
    %344 = vector.broadcast %343 : vector<1x256xi1> to vector<16x256xi1>
    %345 = arith.select %344, %341, %342 : vector<16x256xi1>, vector<16x256xbf16>
    %346 = tpu.concatenate %304, %307, %314, %321, %297, %328, %335, %338, %345 in 0 : vector<16x256xbf16>, vector<16x256xbf16>, vector<16x256xbf16>, vector<16x256xbf16>, vector<16x256xbf16>, vector<16x256xbf16>, vector<16x256xbf16>, vector<16x256xbf16>, vector<16x256xbf16> -> vector<144x256xbf16>
    %cst_118 = arith.constant dense<0.000000e+00> : vector<8x256xf32>
    %347 = tpu.matmul %27, %346, %cst_118 {dimension_numbers = #tpu.dot_dimension_numbers<[1], [0], [0], [1], [0, 0, 1, 1], [], []>} : vector<8x144xbf16>, vector<144x256xbf16>, vector<8x256xf32> -> vector<8x256xf32>
    %348 = vector.extract_strided_slice %296 {offsets = [0, 0], sizes = [1, 1], strides = [1, 1]} : vector<1x2xf32> to vector<1x1xf32>
    %349 = vector.extract_strided_slice %347 {offsets = [0, 0], sizes = [4, 256], strides = [1, 1]} : vector<8x256xf32> to vector<4x256xf32>
    %350 = vector.broadcast %348 : vector<1x1xf32> to vector<4x256xf32>
    %351 = arith.mulf %350, %349 : vector<4x256xf32>
    %352 = vector.extract_strided_slice %296 {offsets = [0, 1], sizes = [1, 1], strides = [1, 1]} : vector<1x2xf32> to vector<1x1xf32>
    %353 = vector.extract_strided_slice %347 {offsets = [4, 0], sizes = [4, 256], strides = [1, 1]} : vector<8x256xf32> to vector<4x256xf32>
    %354 = vector.broadcast %352 : vector<1x1xf32> to vector<4x256xf32>
    %355 = arith.mulf %354, %353 : vector<4x256xf32>
    %356 = arith.addf %351, %355 : vector<4x256xf32>
    %357 = vector.extract_strided_slice %112 {offsets = [0, 0], sizes = [4, 256], strides = [1, 1]} : vector<16x256xf32> to vector<4x256xf32>
    %358 = vector.extract_strided_slice %195 {offsets = [0, 0], sizes = [4, 256], strides = [1, 1]} : vector<16x256xf32> to vector<4x256xf32>
    %359 = vector.extract_strided_slice %278 {offsets = [0, 0], sizes = [4, 256], strides = [1, 1]} : vector<16x256xf32> to vector<4x256xf32>
    %360 = tpu.concatenate %357, %358, %359, %356 in 0 : vector<4x256xf32>, vector<4x256xf32>, vector<4x256xf32>, vector<4x256xf32> -> vector<16x256xf32>
    %cst_119 = arith.constant dense<0.000000e+00> : vector<16xf32>
    %361 = vector.multi_reduction <add>, %360, %cst_119 [1] : vector<16x256xf32> to vector<16xf32>
    %362 = vector.shape_cast %361 : vector<16xf32> to vector<16x1xf32>
    %cst_120 = arith.constant 2.560000e+02 : f32
    %363 = vector.broadcast %cst_120 : f32 to vector<16x1xf32>
    %364 = arith.divf %362, %363 : vector<16x1xf32>
    %365 = vector.broadcast %364 : vector<16x1xf32> to vector<16x256xf32>
    %366 = arith.subf %360, %365 : vector<16x256xf32>
    %367 = vector.broadcast %364 : vector<16x1xf32> to vector<16x256xf32>
    %368 = arith.subf %360, %367 : vector<16x256xf32>
    %369 = arith.mulf %366, %368 : vector<16x256xf32>
    %cst_121 = arith.constant dense<0.000000e+00> : vector<16xf32>
    %370 = vector.multi_reduction <add>, %369, %cst_121 [1] : vector<16x256xf32> to vector<16xf32>
    %371 = vector.shape_cast %370 : vector<16xf32> to vector<16x1xf32>
    %cst_122 = arith.constant 2.560000e+02 : f32
    %372 = vector.broadcast %cst_122 : f32 to vector<16x1xf32>
    %373 = arith.divf %371, %372 : vector<16x1xf32>
    %374 = math.sqrt %373 : vector<16x1xf32>
    %375 = arith.addf %374, %364 : vector<16x1xf32>
    %c0_123 = arith.constant 0 : index
    %c0_124 = arith.constant 0 : index
    %376 = vector.load %arg6[%c0_123, %c0_124] : memref<16x1xf32, #tpu.memory_space<vmem>>, vector<16x1xf32>
    %377 = arith.mulf %375, %376 : vector<16x1xf32>
    %cst_125 = arith.constant dense<0.000000e+00> : vector<1xf32>
    %378 = vector.multi_reduction <add>, %377, %cst_125 [0] : vector<16x1xf32> to vector<1xf32>
    %379 = vector.shape_cast %378 : vector<1xf32> to vector<1x1xf32>
    %c0_126 = arith.constant 0 : index
    %c0_127 = arith.constant 0 : index
    %380 = vector.load %arg7[%c0_126, %c0_127] : memref<1x1xf32, #tpu.memory_space<vmem>>, vector<1x1xf32>
    %381 = arith.addf %379, %380 : vector<1x1xf32>
    %cst_128 = arith.constant 0.000000e+00 : f32
    %382 = vector.broadcast %cst_128 : f32 to vector<1x1xf32>
    %383 = arith.maximumf %381, %382 : vector<1x1xf32>
    %c0_129 = arith.constant 0 : index
    %c0_130 = arith.constant 0 : index
    %384 = vector.load %arg8[%c0_129, %c0_130] : memref<16x1xf32, #tpu.memory_space<vmem>>, vector<16x1xf32>
    %385 = vector.broadcast %383 : vector<1x1xf32> to vector<16x1xf32>
    %386 = arith.mulf %384, %385 : vector<16x1xf32>
    %cst_131 = arith.constant dense<0.000000e+00> : vector<16xf32>
    %387 = vector.multi_reduction <add>, %386, %cst_131 [1] : vector<16x1xf32> to vector<16xf32>
    %388 = vector.shape_cast %387 : vector<16xf32> to vector<16x1xf32>
    %c0_132 = arith.constant 0 : index
    %c0_133 = arith.constant 0 : index
    %389 = vector.load %arg9[%c0_132, %c0_133] : memref<16x1xf32, #tpu.memory_space<vmem>>, vector<16x1xf32>
    %390 = arith.addf %388, %389 : vector<16x1xf32>
    %391 = arith.negf %390 : vector<16x1xf32>
    %392 = math.exp %391 : vector<16x1xf32>
    %cst_134 = arith.constant 1.000000e+00 : f32
    %393 = vector.broadcast %cst_134 : f32 to vector<16x1xf32>
    %394 = arith.addf %393, %392 : vector<16x1xf32>
    %395 = arith.divf %393, %394 : vector<16x1xf32>
    %396 = vector.broadcast %395 : vector<16x1xf32> to vector<16x256xf32>
    %397 = arith.mulf %360, %396 : vector<16x256xf32>
    %398 = arith.addf %397, %29 : vector<16x256xf32>
    %c0_135 = arith.constant 0 : index
    %c0_136 = arith.constant 0 : index
    %c0_137 = arith.constant 0 : index
    %399 = vector.load %arg10[%c0_135, %c0_136, %c0_137] : memref<1x16x256xf32, #tpu.memory_space<vmem>>, vector<1x16x256xf32>
    %400 = vector.shape_cast %399 : vector<1x16x256xf32> to vector<16x256xf32>
    %401 = vector.shape_cast %398 : vector<16x256xf32> to vector<1x16x256xf32>
    tpu.vector_store %arg10[%c0_135, %c0_136, %c0_137], %401 {strides = array<i32>} : memref<1x16x256xf32, #tpu.memory_space<vmem>>, vector<1x16x256xf32>,
    return
  }
  func.func @transform_0(%arg0: i32) -> (i32, i32, i32) {
    %c0_i32 = arith.constant 0 : i32
    %c0_i32_0 = arith.constant 0 : i32
    %c0_i32_1 = arith.constant 0 : i32
    return %arg0, %c0_i32, %c0_i32_0 : i32, i32, i32
  }
  func.func @transform_1(%arg0: i32) -> (i32, i32, i32) {
    %c0_i32 = arith.constant 0 : i32
    %c0_i32_0 = arith.constant 0 : i32
    %c0_i32_1 = arith.constant 0 : i32
    %c0_i32_2 = arith.constant 0 : i32
    return %c0_i32, %c0_i32_0, %c0_i32_1 : i32, i32, i32
  }
  func.func @transform_2(%arg0: i32) -> (i32, i32) {
    %c0_i32 = arith.constant 0 : i32
    %c0_i32_0 = arith.constant 0 : i32
    %c0_i32_1 = arith.constant 0 : i32
    return %c0_i32, %c0_i32_0 : i32, i32
  }
  func.func @transform_3(%arg0: i32) -> (i32, i32, i32) {
    %c0_i32 = arith.constant 0 : i32
    %c0_i32_0 = arith.constant 0 : i32
    %c0_i32_1 = arith.constant 0 : i32
    %c0_i32_2 = arith.constant 0 : i32
    return %c0_i32, %c0_i32_0, %c0_i32_1 : i32, i32, i32
  }
  func.func @transform_4(%arg0: i32) -> (i32, i32, i32) {
    %c0_i32 = arith.constant 0 : i32
    %c0_i32_0 = arith.constant 0 : i32
    %c0_i32_1 = arith.constant 0 : i32
    %c0_i32_2 = arith.constant 0 : i32
    return %c0_i32, %c0_i32_0, %c0_i32_1 : i32, i32, i32
  }
  func.func @transform_5(%arg0: i32) -> (i32, i32) {
    %c0_i32 = arith.constant 0 : i32
    %c0_i32_0 = arith.constant 0 : i32
    %c0_i32_1 = arith.constant 0 : i32
    return %c0_i32, %c0_i32_0 : i32, i32
  }
  func.func @transform_6(%arg0: i32) -> (i32, i32) {
    %c0_i32 = arith.constant 0 : i32
    %c0_i32_0 = arith.constant 0 : i32
    %c0_i32_1 = arith.constant 0 : i32
    return %c0_i32, %c0_i32_0 : i32, i32
  }
  func.func @transform_7(%arg0: i32) -> (i32, i32) {
    %c0_i32 = arith.constant 0 : i32
    %c0_i32_0 = arith.constant 0 : i32
    %c0_i32_1 = arith.constant 0 : i32
    return %c0_i32, %c0_i32_0 : i32, i32
  }
  func.func @transform_8(%arg0: i32) -> (i32, i32) {
    %c0_i32 = arith.constant 0 : i32
    %c0_i32_0 = arith.constant 0 : i32
    %c0_i32_1 = arith.constant 0 : i32
    return %c0_i32, %c0_i32_0 : i32, i32
  }
  func.func @transform_9(%arg0: i32) -> (i32, i32, i32) {
    %c0_i32 = arith.constant 0 : i32
    %c0_i32_0 = arith.constant 0 : i32
    %c0_i32_1 = arith.constant 0 : i32
    return %arg0, %c0_i32, %c0_i32_0 : i32, i32, i32
  }
}

</mosaic_0001>

<llo_original>
// kernel: crf_forward.1
$region0: #{crf_forward.1}
  #allocation0 [shape = 'u32[]', space=smem, size = 0x4, offset = 0x4, fixed_abs, tag = 'smem constant byte address 0x4 - core index']
  #allocation1 [shape = 'u32[144,128]{1,0:T(1,128)}', space=vmem, size = 0x12000, scoped, tag = 'internal scratch']
  #allocation2 [shape = 'f32[1,1]{1,0:T(1,128)S(1)}', space=vmem, size = 0x200, scoped, tag = 'scoped memory for crf_forward.1']
  %s0 = inlined_call_operand.vmem [shape: f32[2,16,256], index: 0, kind: input, shape index: {}]
  %s1 = inlined_call_operand.vmem [shape: bf16[3,32,144], index: 1, kind: input, shape index: {}]
  %s2 = inlined_call_operand.vmem [shape: bf16[8,144], index: 2, kind: input, shape index: {}]
  %s3 = inlined_call_operand.vmem [shape: f32[4,16,2], index: 3, kind: input, shape index: {}]
  %s4 = inlined_call_operand.vmem [shape: f32[4,1,2], index: 4, kind: input, shape index: {}]
  %s5 = inlined_call_operand.vmem [shape: f32[16,1], index: 5, kind: input, shape index: {}]
  %s6 = inlined_call_operand.<no memory space> [shape: f32[1,1], index: 6, kind: input, shape index: {}]
  %s7 = inlined_call_operand.vmem [shape: f32[16,1], index: 7, kind: input, shape index: {}]
  %s8 = inlined_call_operand.vmem [shape: f32[16,1], index: 8, kind: input, shape index: {}]
  %s9 = inlined_call_operand.vmem [shape: f32[2,16,256], index: 9, kind: output, shape index: {}]
  %s10 = sld [smem:[#allocation0]]
  $region69: #{crf_forward.1} parent=0
    _
  %s12 = ssub.s32 1, %s10
  %s13 = scalar_select 0, %s12, %s10
  %v14 = vstv %s6
  %15 = vst [vmem:[#allocation2] sm:$0x1] %v14
  loop: start=0, step=1, limit=4
  $region2: #{crf_forward.1} parent=0 // loop_pre_header
    _
  $region3: #{crf_forward.1} parent=0 // loop_header
    %s17 = sphi 0, %s21
    %p18 = scmp.ge.s32.totalorder %s17, 4
    %s27 = sphi 0, %s29
    %s30 = sphi 0, %s27
    %s31 = sphi 0, %s30
    %s47 = sphi 0, %s31
    %s51 = sphi 0, %s51
    %s53 = sphi 0, %s51
    %s54 = sphi 0, %s53
    %s68 = sphi 0, %s54
    %s72 = sphi 0, %s72
    %s74 = sphi 0, %s72
    %s75 = sphi 0, %s74
    %s89 = sphi 0, %s75
    %s93 = sphi 0, %s93
    %s95 = sphi 0, %s93
    %s96 = sphi 0, %s95
    %s110 = sphi 0, %s96
    %s114 = sphi 0, %s114
    %s116 = sphi 0, %s114
    %s117 = sphi 0, %s116
    %s131 = sphi 0, %s117
    %s135 = sphi 0, %s135
    %s137 = sphi 0, %s135
    %s138 = sphi 0, %s137
    %s152 = sphi 0, %s138
    %s156 = sphi 0, %s156
    %s158 = sphi 0, %s156
    %s159 = sphi 0, %s158
    %s173 = sphi 0, %s159
    %s177 = sphi 0, %s177
    %s179 = sphi 0, %s177
    %s180 = sphi 0, %s179
    %s194 = sphi 0, %s180
    %s198 = sphi 0, %s198
    %s200 = sphi 0, %s198
    %s201 = sphi 0, %s200
    %s215 = sphi 0, %s201
    %s221 = sphi 0, %s223
    %s224 = sphi 0, %s221
    %s225 = sphi 0, %s224
    %s241 = sphi 0, %s225
  $region4: #{crf_forward.1} parent=0 // loop_header_branch
    %20 = sbr.rel (%p18) target = $region8
  $region5: #{crf_forward.1} parent=0 // loop_body
    %s22 = ssub.s32 %s17, 1
    %s23 = ssub.s32 %s17, 2
    %s24 = sadd.s32 %s17, 1
    %s25 = ssub.s32 %s17, %s24
    %p26 = scmp.eq.s32.totalorder %s25, 0
    %s28 = sadd.s32 %s27, 1
    %s29 = scalar_select %p26, %s27, %s28
    %p32 = pneg %p26
    %p33 = scmp.eq.s32.totalorder %s17, 1
    %p34 = por %p32, %p33
    %p35 = scmp.ne.s32.totalorder %s27, %s30
    %p36 = scmp.eq.s32.totalorder %s17, 0
    %p37 = por %p35, %p36
    %p38 = scmp.ne.s32.totalorder %s27, %s30
    %p39 = scmp.eq.s32.totalorder %s22, 1
    %p40 = por %p38, %p39
    %p41 = scmp.ne.s32.totalorder %s30, %s31
    %p42 = scmp.eq.s32.totalorder %s22, 0
    %p43 = por %p41, %p42
    %p44 = scmp.ne.s32.totalorder %s30, %s31
    %p45 = scmp.eq.s32.totalorder %s23, 1
    %p46 = por %p44, %p45
    %p48 = scmp.ne.s32.totalorder %s31, %s47
    %p49 = scmp.eq.s32.totalorder %s23, 0
    %p50 = por %p48, %p49
    %s52 = sadd.s32 %s51, 1
    %p55 = scmp.eq.s32.totalorder %s17, 1
    %p56 = scmp.ne.s32.totalorder %s51, %s53
    %p57 = scmp.eq.s32.totalorder %s17, 0
    %p58 = por %p56, %p57
    %p59 = scmp.ne.s32.totalorder %s51, %s53
    %p60 = scmp.eq.s32.totalorder %s22, 1
    %p61 = por %p59, %p60
    %p62 = scmp.ne.s32.totalorder %s53, %s54
    %p63 = scmp.eq.s32.totalorder %s22, 0
    %p64 = por %p62, %p63
    %p65 = scmp.ne.s32.totalorder %s53, %s54
    %p66 = scmp.eq.s32.totalorder %s23, 1
    %p67 = por %p65, %p66
    %p69 = scmp.ne.s32.totalorder %s54, %s68
    %p70 = scmp.eq.s32.totalorder %s23, 0
    %p71 = por %p69, %p70
    %s73 = sadd.s32 %s72, 1
    %p76 = scmp.eq.s32.totalorder %s17, 1
    %p77 = scmp.ne.s32.totalorder %s72, %s74
    %p78 = scmp.eq.s32.totalorder %s17, 0
    %p79 = por %p77, %p78
    %p80 = scmp.ne.s32.totalorder %s72, %s74
    %p81 = scmp.eq.s32.totalorder %s22, 1
    %p82 = por %p80, %p81
    %p83 = scmp.ne.s32.totalorder %s74, %s75
    %p84 = scmp.eq.s32.totalorder %s22, 0
    %p85 = por %p83, %p84
    %p86 = scmp.ne.s32.totalorder %s74, %s75
    %p87 = scmp.eq.s32.totalorder %s23, 1
    %p88 = por %p86, %p87
    %p90 = scmp.ne.s32.totalorder %s75, %s89
    %p91 = scmp.eq.s32.totalorder %s23, 0
    %p92 = por %p90, %p91
    %s94 = sadd.s32 %s93, 1
    %p97 = scmp.eq.s32.totalorder %s17, 1
    %p98 = scmp.ne.s32.totalorder %s93, %s95
    %p99 = scmp.eq.s32.totalorder %s17, 0
    %p100 = por %p98, %p99
    %p101 = scmp.ne.s32.totalorder %s93, %s95
    %p102 = scmp.eq.s32.totalorder %s22, 1
    %p103 = por %p101, %p102
    %p104 = scmp.ne.s32.totalorder %s95, %s96
    %p105 = scmp.eq.s32.totalorder %s22, 0
    %p106 = por %p104, %p105
    %p107 = scmp.ne.s32.totalorder %s95, %s96
    %p108 = scmp.eq.s32.totalorder %s23, 1
    %p109 = por %p107, %p108
    %p111 = scmp.ne.s32.totalorder %s96, %s110
    %p112 = scmp.eq.s32.totalorder %s23, 0
    %p113 = por %p111, %p112
    %s115 = sadd.s32 %s114, 1
    %p118 = scmp.eq.s32.totalorder %s17, 1
    %p119 = scmp.ne.s32.totalorder %s114, %s116
    %p120 = scmp.eq.s32.totalorder %s17, 0
    %p121 = por %p119, %p120
    %p122 = scmp.ne.s32.totalorder %s114, %s116
    %p123 = scmp.eq.s32.totalorder %s22, 1
    %p124 = por %p122, %p123
    %p125 = scmp.ne.s32.totalorder %s116, %s117
    %p126 = scmp.eq.s32.totalorder %s22, 0
    %p127 = por %p125, %p126
    %p128 = scmp.ne.s32.totalorder %s116, %s117
    %p129 = scmp.eq.s32.totalorder %s23, 1
    %p130 = por %p128, %p129
    %p132 = scmp.ne.s32.totalorder %s117, %s131
    %p133 = scmp.eq.s32.totalorder %s23, 0
    %p134 = por %p132, %p133
    %s136 = sadd.s32 %s135, 1
    %p139 = scmp.eq.s32.totalorder %s17, 1
    %p140 = scmp.ne.s32.totalorder %s135, %s137
    %p141 = scmp.eq.s32.totalorder %s17, 0
    %p142 = por %p140, %p141
    %p143 = scmp.ne.s32.totalorder %s135, %s137
    %p144 = scmp.eq.s32.totalorder %s22, 1
    %p145 = por %p143, %p144
    %p146 = scmp.ne.s32.totalorder %s137, %s138
    %p147 = scmp.eq.s32.totalorder %s22, 0
    %p148 = por %p146, %p147
    %p149 = scmp.ne.s32.totalorder %s137, %s138
    %p150 = scmp.eq.s32.totalorder %s23, 1
    %p151 = por %p149, %p150
    %p153 = scmp.ne.s32.totalorder %s138, %s152
    %p154 = scmp.eq.s32.totalorder %s23, 0
    %p155 = por %p153, %p154
    %s157 = sadd.s32 %s156, 1
    %p160 = scmp.eq.s32.totalorder %s17, 1
    %p161 = scmp.ne.s32.totalorder %s156, %s158
    %p162 = scmp.eq.s32.totalorder %s17, 0
    %p163 = por %p161, %p162
    %p164 = scmp.ne.s32.totalorder %s156, %s158
    %p165 = scmp.eq.s32.totalorder %s22, 1
    %p166 = por %p164, %p165
    %p167 = scmp.ne.s32.totalorder %s158, %s159
    %p168 = scmp.eq.s32.totalorder %s22, 0
    %p169 = por %p167, %p168
    %p170 = scmp.ne.s32.totalorder %s158, %s159
    %p171 = scmp.eq.s32.totalorder %s23, 1
    %p172 = por %p170, %p171
    %p174 = scmp.ne.s32.totalorder %s159, %s173
    %p175 = scmp.eq.s32.totalorder %s23, 0
    %p176 = por %p174, %p175
    %s178 = sadd.s32 %s177, 1
    %p181 = scmp.eq.s32.totalorder %s17, 1
    %p182 = scmp.ne.s32.totalorder %s177, %s179
    %p183 = scmp.eq.s32.totalorder %s17, 0
    %p184 = por %p182, %p183
    %p185 = scmp.ne.s32.totalorder %s177, %s179
    %p186 = scmp.eq.s32.totalorder %s22, 1
    %p187 = por %p185, %p186
    %p188 = scmp.ne.s32.totalorder %s179, %s180
    %p189 = scmp.eq.s32.totalorder %s22, 0
    %p190 = por %p188, %p189
    %p191 = scmp.ne.s32.totalorder %s179, %s180
    %p192 = scmp.eq.s32.totalorder %s23, 1
    %p193 = por %p191, %p192
    %p195 = scmp.ne.s32.totalorder %s180, %s194
    %p196 = scmp.eq.s32.totalorder %s23, 0
    %p197 = por %p195, %p196
    %s199 = sadd.s32 %s198, 1
    %p202 = scmp.eq.s32.totalorder %s17, 1
    %p203 = scmp.ne.s32.totalorder %s198, %s200
    %p204 = scmp.eq.s32.totalorder %s17, 0
    %p205 = por %p203, %p204
    %p206 = scmp.ne.s32.totalorder %s198, %s200
    %p207 = scmp.eq.s32.totalorder %s22, 1
    %p208 = por %p206, %p207
    %p209 = scmp.ne.s32.totalorder %s200, %s201
    %p210 = scmp.eq.s32.totalorder %s22, 0
    %p211 = por %p209, %p210
    %p212 = scmp.ne.s32.totalorder %s200, %s201
    %p213 = scmp.eq.s32.totalorder %s23, 1
    %p214 = por %p212, %p213
    %p216 = scmp.ne.s32.totalorder %s201, %s215
    %p217 = scmp.eq.s32.totalorder %s23, 0
    %p218 = por %p216, %p217
    %s219 = ssub.s32 %s17, %s24
    %p220 = scmp.eq.s32.totalorder %s219, 0
    %s222 = sadd.s32 %s221, 1
    %s223 = scalar_select %p220, %s221, %s222
    %p226 = pneg %p220
    %p227 = scmp.eq.s32.totalorder %s17, 1
    %p228 = por %p226, %p227
    %p229 = scmp.ne.s32.totalorder %s221, %s224
    %p230 = scmp.eq.s32.totalorder %s17, 0
    %p231 = por %p229, %p230
    %p232 = scmp.ne.s32.totalorder %s221, %s224
    %p233 = scmp.eq.s32.totalorder %s22, 1
    %p234 = por %p232, %p233
    %p235 = scmp.ne.s32.totalorder %s224, %s225
    %p236 = scmp.eq.s32.totalorder %s22, 0
    %p237 = por %p235, %p236
    %p238 = scmp.ne.s32.totalorder %s224, %s225
    %p239 = scmp.eq.s32.totalorder %s23, 1
    %p240 = por %p238, %p239
    %p242 = scmp.ne.s32.totalorder %s225, %s241
    %p243 = scmp.eq.s32.totalorder %s23, 0
    %p244 = por %p242, %p243
    %p245 = scmp.le.s32.totalorder 1, %s17
    %p246 = scmp.lt.s32.totalorder %s17, 3
    %p247 = pnand %p245, %p246
    %p248 = pneg %p247
    // Predicated region
    $region9: #{crf_forward.1} parent=5 // pred_check
      _
    $region10: #{crf_forward.1} parent=5 // pred_check_branch
      %250 = sbr.rel (%p247) target = $region12
    $region11: #{crf_forward.1} parent=5 // pred_region
      %s251 = ssub.s32 %s17, 1
      // Predicated region
      $region13: #{crf_forward.1} parent=11 // pred_check
        %p252 = pneg %p64
      $region14: #{crf_forward.1} parent=11 // pred_check_branch
        %254 = sbr.rel (%p252) target = $region16
      $region15: #{crf_forward.1} parent=11 // pred_region
        _
      $region16: #{crf_forward.1} parent=11 // pred_fallthru
        _
      // Predicated region
      $region17: #{crf_forward.1} parent=11 // pred_check
        %p255 = pneg %p85
      $region18: #{crf_forward.1} parent=11 // pred_check_branch
        %257 = sbr.rel (%p255) target = $region20
      $region19: #{crf_forward.1} parent=11 // pred_region
        _
      $region20: #{crf_forward.1} parent=11 // pred_fallthru
        _
      // Predicated region
      $region21: #{crf_forward.1} parent=11 // pred_check
        %p258 = pneg %p106
      $region22: #{crf_forward.1} parent=11 // pred_check_branch
        %260 = sbr.rel (%p258) target = $region24
      $region23: #{crf_forward.1} parent=11 // pred_region
        _
      $region24: #{crf_forward.1} parent=11 // pred_fallthru
        _
      // Predicated region
      $region25: #{crf_forward.1} parent=11 // pred_check
        %p261 = pneg %p127
      $region26: #{crf_forward.1} parent=11 // pred_check_branch
        %263 = sbr.rel (%p261) target = $region28
      $region27: #{crf_forward.1} parent=11 // pred_region
        _
      $region28: #{crf_forward.1} parent=11 // pred_fallthru
        _
      // Predicated region
      $region29: #{crf_forward.1} parent=11 // pred_check
        %p264 = pneg %p148
      $region30: #{crf_forward.1} parent=11 // pred_check_branch
        %266 = sbr.rel (%p264) target = $region32
      $region31: #{crf_forward.1} parent=11 // pred_region
        _
      $region32: #{crf_forward.1} parent=11 // pred_fallthru
        _
      // Predicated region
      $region33: #{crf_forward.1} parent=11 // pred_check
        %p267 = pneg %p169
      $region34: #{crf_forward.1} parent=11 // pred_check_branch
        %269 = sbr.rel (%p267) target = $region36
      $region35: #{crf_forward.1} parent=11 // pred_region
        _
      $region36: #{crf_forward.1} parent=11 // pred_fallthru
        _
      // Predicated region
      $region37: #{crf_forward.1} parent=11 // pred_check
        %p270 = pneg %p190
      $region38: #{crf_forward.1} parent=11 // pred_check_branch
        %272 = sbr.rel (%p270) target = $region40
      $region39: #{crf_forward.1} parent=11 // pred_region
        _
      $region40: #{crf_forward.1} parent=11 // pred_fallthru
        _
      // Predicated region
      $region41: #{crf_forward.1} parent=11 // pred_check
        %p273 = pneg %p211
      $region42: #{crf_forward.1} parent=11 // pred_check_branch
        %275 = sbr.rel (%p273) target = $region44
      $region43: #{crf_forward.1} parent=11 // pred_region
        _
      $region44: #{crf_forward.1} parent=11 // pred_fallthru
        _
    $region12: #{crf_forward.1} parent=5 // pred_fallthru
      _
    %p276 = scmp.lt.s32.totalorder %s17, 2
    // Predicated region
    $region45: #{crf_forward.1} parent=5 // pred_check
      %p277 = pneg %p276
    $region46: #{crf_forward.1} parent=5 // pred_check_branch
      %279 = sbr.rel (%p277) target = $region48
    $region47: #{crf_forward.1} parent=5 // pred_region
      // Predicated region
      $region49: #{crf_forward.1} parent=47 // pred_check
        %p280 = pneg %p37
      $region50: #{crf_forward.1} parent=47 // pred_check_branch
        %282 = sbr.rel (%p280) target = $region52
      $region51: #{crf_forward.1} parent=47 // pred_region
        %p283 = scmp.lt.s32.totalorder %s17, 1
        %s284 = scalar_select %p283, %s17, 1
        %s285 = smul.addr %s284, 4
        %s286 = smul.addr %s285, 8
        %s287 = scalar_lea.vmem %s0, %s286
      $region52: #{crf_forward.1} parent=47 // pred_fallthru
        _
    $region48: #{crf_forward.1} parent=5 // pred_fallthru
      _
    %p288 = scmp.le.s32.totalorder 1, %s17
    %p289 = scmp.lt.s32.totalorder %s17, 3
    %p290 = pnand %p288, %p289
    %p291 = pneg %p290
    // Predicated region
    $region53: #{crf_forward.1} parent=5 // pred_check
      _
    $region54: #{crf_forward.1} parent=5 // pred_check_branch
      %293 = sbr.rel (%p290) target = $region56
    $region55: #{crf_forward.1} parent=5 // pred_region
      %s294 = ssub.s32 %s17, 1
      %p295 = scmp.lt.s32.totalorder %s22, 1
      %s296 = scalar_select %p295, %s22, 1
      %s297 = smul.addr %s296, 4
      %s298 = smul.addr %s297, 8
      %s299 = scalar_lea.vmem %s0, %s298
      %p300 = pneg %p43
      %p301 = pneg %p40
      %p302 = pneg %p64
      %p303 = pneg %p61
      %p304 = pneg %p85
      %p305 = pneg %p82
      %p306 = pneg %p106
      %p307 = pneg %p103
      %p308 = pneg %p127
      %p309 = pneg %p124
      %p310 = pneg %p148
      %p311 = pneg %p145
      %p312 = pneg %p169
      %p313 = pneg %p166
      %p314 = pneg %p190
      %p315 = pneg %p187
      %p316 = pneg %p211
      %p317 = pneg %p208
      %p318 = pneg %p237
      %p319 = pneg %p234
      %p320 = scmp.lt.s32.totalorder %s22, 1
      %s321 = scalar_select %p320, %s22, 1
      %s322 = smul.addr %s321, 4
      %s323 = smul.addr %s322, 8
      %s324 = scalar_lea.vmem %s9, %s323
      %p325 = scmp.lt.s32.totalorder %s22, 1
      %s326 = scalar_select %p325, %s22, 1
      %s327 = smul.addr %s326, 4
      %s328 = smul.addr %s327, 8
      %s329 = scalar_lea.vmem %s0, %s328
      %p330 = scmp.lt.s32.totalorder %s22, 1
      %s331 = scalar_select %p330, %s22, 1
      %s332 = smul.addr %s331, 4
      %s333 = smul.addr %s332, 8
      %s334 = scalar_lea.vmem %s9, %s333
      %v338 = vlaneseq
      %v339 = vand.u32 %v338, 127
      %v340 = vadd.s32 %v339, 128
      %vm341 = vcmp.lt.s32.totalorder %v339, 0
      %v342 = vsub.s32 0, %v339
      %v343 = vsel %vm341, %v342, %v339
      %v344 = vshrl.u32 %v343, 4
      %v345 = vand.u32 %v343, 15
      %v346 = vsub.s32 0, %v345
      %v347 = vsel %vm341, %v346, %v345
      %vm348 = vcmp.lt.s32.totalorder %v340, 0
      %v349 = vsub.s32 0, %v340
      %v350 = vsel %vm348, %v349, %v340
      %v351 = vshrl.u32 %v350, 4
      %v352 = vand.u32 %v350, 15
      %v353 = vsub.s32 0, %v352
      %v354 = vsel %vm348, %v353, %v352
      %vm355 = vcmp.ne.s32.totalorder %v347, 0
      %vm356 = vcmp.ne.s32.totalorder %v354, 0
      %vm357 = vcmp.lt.s32.totalorder %v347, 0
      %vm358 = vcmp.lt.s32.totalorder %v354, 0
      %vm359 = vmand %vm357, %vm355
      %vm360 = vmand %vm358, %vm356
      %v361 = vadd.s32 %v347, 16
      %v362 = vadd.s32 %v354, 16
      %v363 = vsel %vm359, %v361, %v347
      %v364 = vsel %vm360, %v362, %v354
      %vm365 = vcmp.ne.s32.totalorder %v363, 0
      %vm366 = vcmp.ne.s32.totalorder %v364, 0
      %vm367 = vcmp.ne.s32.totalorder %v363, 15
      %vm368 = vcmp.ne.s32.totalorder %v364, 15
      %v369 = vld [vmem:[%s1] sm:$0xff]
      %v370 = vld [vmem:[%s1 + $0x8] sm:$0xff]
      %v371 = vld [vmem:[%s1 + $0x10] sm:$0xff]
      %v372 = vld [vmem:[%s1 + $0x18] sm:$0xff]
      %s373 = scalar_lea.vmem %s1, 32
      %v374 = vld [vmem:[%s373] sm:$0xff]
      %v375 = vld [vmem:[%s373 + $0x8] sm:$0xff]
      %v376 = vld [vmem:[%s373 + $0x10] sm:$0xff]
      %v377 = vld [vmem:[%s373 + $0x18] sm:$0xff]
      %s378 = scalar_lea.vmem %s1, 64
      %v379 = vld [vmem:[%s378] sm:$0xff]
      %v380 = vld [vmem:[%s378 + $0x8] sm:$0xff]
      %v381 = vld [vmem:[%s378 + $0x10] sm:$0xff]
      %v382 = vld [vmem:[%s378 + $0x18] sm:$0xff]
      %v383 = vld [vmem:[%s2] sm:$0xff]
      %v384 = vld [vmem:[%s329] sm:$0xff]
      %v385 = vld [vmem:[%s329 + $0x8] sm:$0xff]
      %v386 = vld [vmem:[%s329 + $0x10] sm:$0xff]
      %v387 = vld [vmem:[%s329 + $0x18] sm:$0xff]
      %v388 = vadd.f32 %v384, %v385
      %389 = vadd.xlane.f32.xlu0 %v388
      %v390 = vpop.xlane.xlu0 %389
      %v391 = vadd.f32 %v386, %v387
      %392 = vadd.xlane.f32.xlu0 %v391
      %v393 = vpop.xlane.xlu0 %392
      %v394 = vrcp.pop 256.0
      %v395 = vmul.f32 %v390, %v394
      %v396 = vmul.f32 %v393, %v394
      %v397 = vld [vmem:[%s3] sm:$0xff]
      %v398 = vld [vmem:[%s3 + $0x8] sm:$0xff]
      %v399 = vmul.f32 %v395, %v397
      %v400 = vmul.f32 %v396, %v398
      %vm401 = vcmask 15360
      %v402 = vsel %vm401, %v399, 0.0
      %v403 = vsel %vm401, %v400, 0.0
      %v404 = vadd.f32 %v402, %v403
      %v405 = vrot.slane %v404, 4
      %v406 = vadd.f32 %v404, %v405
      %v407 = vrot.slane %v406, 2
      %v408 = vadd.f32 %v406, %v407
      %v409 = vrot.slane %v408, 1
      %v410 = vadd.f32 %v408, %v409
      %v411 = vld [vmem:[%s4] sm:$0x1]
      %v412 = vadd.f32 %v410, %v411
      %v413 = vxor.u32 %v412, 2147483648
      %v414 = vmul.f32 %v413, 1.442695
      %v415 = vpow.pop %v414
      %v416 = vadd.f32 %v415, 1.0
      %v417 = vrcp.pop %v416
      %v418 = vmul.f32 1.0, %v417
      %v419 = vpack.c.bf16 %v386, %v384
      %v420 = vpack.c.bf16 %v387, %v385
      %423 = vrot.lane.b32.xlu0 %v419, 17
      %v424 = vpop.permute.xlu0 %423
      %425 = vrot.lane.b32.xlu0 %v420, 17
      %v426 = vpop.permute.xlu0 %425
      %vm427 = vcmask 138240
      %v428 = vsel %vm427, %v424, %v426
      %vm430 = vcmask 138240
      %v433 = vsel %vm430, 0, %v424
      %v435 = vsel %vm365, 1, 0
      %v436 = vsel %vm366, 1, 0
      %vm437 = vcmp.eq.s32.totalorder %v435, 1
      %vm438 = vcmp.eq.s32.totalorder %v436, 1
      %vm439 = vmpackc.low %vm438, %vm437
      %v440 = vsel %vm439, 65537, 0
      %v441 = vlaneseq
      %v442 = vshrl.u32 %v441, 7
      %v443 = vsub.s32 0, %v442
      %v444 = vrot.slane %v440, %v443
      %v445 = vlaneseq
      %v446 = vshrl.u32 %v445, 7
      %v447 = vsub.s32 4, %v446
      %v448 = vrot.slane %v440, %v447
      %vm449 = vcmp.ne.s16.totalorder %v444, 0
      %vm450 = vcmp.ne.s16.totalorder %v448, 0
      %v451 = vsel %vm449, %v433, 0
      %v452 = vsel %vm450, %v428, 0
      %453 = vrot.lane.b32.xlu0 %v419, 16
      %v454 = vpop.permute.xlu0 %453
      %455 = vrot.lane.b32.xlu0 %v420, 16
      %v456 = vpop.permute.xlu0 %455
      %vm457 = vcmask 130048
      %v458 = vsel %vm457, %v454, %v456
      %vm460 = vcmask 130048
      %v462 = vsel %vm460, 0, %v454
      %464 = vrot.lane.b32.xlu0 %v419, 15
      %v465 = vpop.permute.xlu0 %464
      %466 = vrot.lane.b32.xlu0 %v420, 15
      %v467 = vpop.permute.xlu0 %466
      %vm468 = vcmask 121856
      %v469 = vsel %vm468, %v465, %v467
      %vm471 = vcmask 121856
      %v473 = vsel %vm471, 0, %v465
      %v475 = vsel %vm367, 1, 0
      %v476 = vsel %vm368, 1, 0
      %vm477 = vcmp.eq.s32.totalorder %v475, 1
      %vm478 = vcmp.eq.s32.totalorder %v476, 1
      %vm479 = vmpackc.low %vm478, %vm477
      %v480 = vsel %vm479, 65537, 0
      %v481 = vlaneseq
      %v482 = vshrl.u32 %v481, 7
      %v483 = vsub.s32 0, %v482
      %v484 = vrot.slane %v480, %v483
      %v485 = vlaneseq
      %v486 = vshrl.u32 %v485, 7
      %v487 = vsub.s32 4, %v486
      %v488 = vrot.slane %v480, %v487
      %vm489 = vcmp.ne.s16.totalorder %v484, 0
      %vm490 = vcmp.ne.s16.totalorder %v488, 0
      %v491 = vsel %vm489, %v473, 0
      %v492 = vsel %vm490, %v469, 0
      %493 = vrot.lane.b32.xlu0 %v419, 1
      %v494 = vpop.permute.xlu0 %493
      %495 = vrot.lane.b32.xlu0 %v420, 1
      %v496 = vpop.permute.xlu0 %495
      %vm497 = vcmask 7168
      %v498 = vsel %vm497, %v494, %v496
      %vm500 = vcmask 7168
      %v502 = vsel %vm500, 0, %v494
      %v504 = vsel %vm449, %v502, 0
      %v505 = vsel %vm450, %v498, 0
      %506 = vrot.lane.b32.xlu0 %v419, 127
      %v507 = vpop.permute.xlu0 %506
      %508 = vrot.lane.b32.xlu0 %v420, 127
      %v509 = vpop.permute.xlu0 %508
      %vm510 = vcmask 1039360
      %v511 = vsel %vm510, %v507, %v509
      %vm513 = vcmask 1039360
      %v515 = vsel %vm513, %v509, 0
      %v517 = vsel %vm489, %v511, 0
      %v518 = vsel %vm490, %v515, 0
      %519 = vrot.lane.b32.xlu0 %v419, 113
      %v520 = vpop.permute.xlu0 %519
      %521 = vrot.lane.b32.xlu0 %v420, 113
      %v522 = vpop.permute.xlu0 %521
      %vm523 = vcmask 924672
      %v524 = vsel %vm523, %v520, %v522
      %vm526 = vcmask 924672
      %v528 = vsel %vm526, %v522, 0
      %v530 = vsel %vm449, %v524, 0
      %v531 = vsel %vm450, %v528, 0
      %532 = vrot.lane.b32.xlu0 %v419, 112
      %v533 = vpop.permute.xlu0 %532
      %534 = vrot.lane.b32.xlu0 %v420, 112
      %v535 = vpop.permute.xlu0 %534
      %vm536 = vcmask 916480
      %v537 = vsel %vm536, %v533, %v535
      %vm539 = vcmask 916480
      %v541 = vsel %vm539, %v535, 0
      %543 = vrot.lane.b32.xlu0 %v419, 111
      %v544 = vpop.permute.xlu0 %543
      %545 = vrot.lane.b32.xlu0 %v420, 111
      %v546 = vpop.permute.xlu0 %545
      %vm547 = vcmask 908288
      %v548 = vsel %vm547, %v544, %v546
      %vm550 = vcmask 908288
      %v552 = vsel %vm550, %v546, 0
      %v554 = vsel %vm489, %v548, 0
      %v555 = vsel %vm490, %v552, 0
      %v560 = vunpack.c.l.b16 %v369
      %v561 = vunpack.c.h.b16 %v369
      %v562 = vunpack.c.l.b16 %v370
      %v563 = vunpack.c.h.b16 %v370
      %v564 = vunpack.c.l.b16 %v371
      %v565 = vunpack.c.h.b16 %v371
      %v566 = vunpack.c.l.b16 %v372
      %v567 = vunpack.c.h.b16 %v372
      %v568 = vpack.c.b16 %v562, %v560
      %v569 = vpack.c.b16 %v563, %v561
      %v570 = vpack.c.b16 %v566, %v564
      %v571 = vpack.c.b16 %v567, %v565
      %v575 = vsel %vm460, %v569, 0
      %v578 = vsel %vm460, %v571, 0
      %580 = vmatprep.subr.bf16.mxu0 %v452
      %581 = vmatpush1.bf16.msra.mxu0 %v451
      %582 = vmatprep.subr.bf16.mxu0 %v458
      %583 = vmatpush1.bf16.msra.mxu0 %v462
      %584 = vmatprep.subr.bf16.mxu0 %v492
      %585 = vmatpush1.bf16.msra.mxu0 %v491
      %586 = vmatprep.subr.bf16.mxu0 %v505
      %587 = vmatpush1.bf16.msra.mxu0 %v504
      %588 = vmatprep.subr.bf16.mxu0 %v420
      %589 = vmatpush1.bf16.msra.mxu0 %v419
      %590 = vmatprep.subr.bf16.mxu0 %v518
      %591 = vmatpush1.bf16.msra.mxu0 %v517
      %592 = vmatprep.subr.bf16.mxu0 %v531
      %593 = vmatpush1.bf16.msra.mxu0 %v530
      %594 = vmatprep.subr.bf16.mxu0 %v541
      %595 = vmatpush1.bf16.msra.mxu0 %v537
      %596 = vmatprep.subr.bf16.mxu0 %v555
      %597 = vmatpush1.bf16.msra.mxu0 %v554
      %598 = vmatprep.subr.bf16.mxu0 0
      %599 = vmatpush1.bf16.msra.mxu0 0
      %600 = vmatprep.subr.bf16.mxu0 0
      %601 = vmatpush1.bf16.msra.mxu0 0
      %602 = vmatprep.subr.bf16.mxu0 0
      %603 = vmatpush1.bf16.msra.mxu0 0
      %604 = vmatprep.subr.bf16.mxu0 0
      %605 = vmatpush1.bf16.msra.mxu0 0
      %606 = vmatprep.subr.bf16.mxu0 0
      %607 = vmatpush1.bf16.msra.mxu0 0
      %608 = vmatprep.subr.bf16.mxu0 0
      %609 = vmatpush1.bf16.msra.mxu0 0
      %610 = vmatprep.subr.bf16.mxu0 0
      %611 = vmatpush1.bf16.msra.mxu0 0
      %612 = vmatprep.mubr.bf16.mxu0 %v575
      %613 = vmatmul.mubr.bf16.gmra.mrb[0].mxu0 %v568
      %v614 = vpop.f32.mrb[0].mxu0
      %v615 = vadd.f32 0.0, %v614
      %v616 = vpop.f32.mrb[0].mxu0
      %v617 = vadd.f32 0.0, %v616
      %v618 = vpop.f32.mrb[0].mxu0
      %v619 = vadd.f32 0.0, %v618
      %v620 = vpop.f32.mrb[0].mxu0
      %v621 = vadd.f32 0.0, %v620
      %622 = vmatprep.mubr.bf16.mxu0 %v578
      %623 = vmatmul.mubr.bf16.gmra.mrb[0].mxu0 %v570
      %v624 = vpop.f32.mrb[0].mxu0
      %v625 = vadd.f32 0.0, %v624
      %v626 = vpop.f32.mrb[0].mxu0
      %v627 = vadd.f32 0.0, %v626
      %v628 = vpop.f32.mrb[0].mxu0
      %v629 = vadd.f32 0.0, %v628
      %v630 = vpop.f32.mrb[0].mxu0
      %v631 = vadd.f32 0.0, %v630
      %632 = vdwg.mxu0
      %s634 = vtos %v418
      %v635 = vstv %s634
      %v637 = vmul.f32 %v635, %v615
      %v638 = vmul.f32 %v635, %v617
      %v639 = vmul.f32 %v635, %v619
      %v640 = vmul.f32 %v635, %v621
      %641 = vrot.lane.b32.xlu0 %v418, 127
      %v642 = vpop.permute.xlu0 %641
      %s643 = vtos %v642
      %v644 = vstv %s643
      %v646 = vmul.f32 %v644, %v625
      %v647 = vmul.f32 %v644, %v627
      %v648 = vmul.f32 %v644, %v629
      %v649 = vmul.f32 %v644, %v631
      %v650 = vadd.f32 %v637, %v646
      %v651 = vadd.f32 %v638, %v647
      %v652 = vadd.f32 %v639, %v648
      %v653 = vadd.f32 %v640, %v649
      %vm654 = vcmp.ge.f32.partialorder %v650, 0.0
      %vm655 = vcmp.ge.f32.partialorder %v651, 0.0
      %vm656 = vcmp.ge.f32.partialorder %v652, 0.0
      %vm657 = vcmp.ge.f32.partialorder %v653, 0.0
      %v658 = vmul.f32 %v650, 0.05
      %v659 = vmul.f32 %v651, 0.05
      %v660 = vmul.f32 %v652, 0.05
      %v661 = vmul.f32 %v653, 0.05
      %v662 = vsel %vm654, %v650, %v658
      %v663 = vsel %vm655, %v651, %v659
      %v664 = vsel %vm656, %v652, %v660
      %v665 = vsel %vm657, %v653, %v661
      %v666 = vadd.f32 %v662, %v663
      %667 = vadd.xlane.f32.xlu0 %v666
      %v668 = vpop.xlane.xlu0 %667
      %v669 = vadd.f32 %v664, %v665
      %670 = vadd.xlane.f32.xlu0 %v669
      %v671 = vpop.xlane.xlu0 %670
      %v672 = vmul.f32 %v668, %v394
      %v673 = vmul.f32 %v671, %v394
      %s674 = scalar_lea.vmem %s3, 16
      %v675 = vld [vmem:[%s674] sm:$0xff]
      %v676 = vld [vmem:[%s674 + $0x8] sm:$0xff]
      %v677 = vmul.f32 %v672, %v675
      %v678 = vmul.f32 %v673, %v676
      %v679 = vsel %vm401, %v677, 0.0
      %v680 = vsel %vm401, %v678, 0.0
      %v681 = vadd.f32 %v679, %v680
      %v682 = vrot.slane %v681, 4
      %v683 = vadd.f32 %v681, %v682
      %v684 = vrot.slane %v683, 2
      %v685 = vadd.f32 %v683, %v684
      %v686 = vrot.slane %v685, 1
      %v687 = vadd.f32 %v685, %v686
      %s688 = scalar_lea.vmem %s4, 1
      %v689 = vld [vmem:[%s688] sm:$0x1]
      %v690 = vadd.f32 %v687, %v689
      %v691 = vxor.u32 %v690, 2147483648
      %v692 = vmul.f32 %v691, 1.442695
      %v693 = vpow.pop %v692
      %v694 = vadd.f32 %v693, 1.0
      %v695 = vrcp.pop %v694
      %v696 = vmul.f32 1.0, %v695
      %v697 = vpack.c.bf16 %v664, %v662
      %v698 = vpack.c.bf16 %v665, %v663
      %701 = vrot.lane.b32.xlu0 %v697, 17
      %v702 = vpop.permute.xlu0 %701
      %703 = vrot.lane.b32.xlu0 %v698, 17
      %v704 = vpop.permute.xlu0 %703
      %v705 = vsel %vm427, %v702, %v704
      %v708 = vsel %vm430, 0, %v702
      %v710 = vsel %vm449, %v708, 0
      %v711 = vsel %vm450, %v705, 0
      %712 = vrot.lane.b32.xlu0 %v697, 16
      %v713 = vpop.permute.xlu0 %712
      %714 = vrot.lane.b32.xlu0 %v698, 16
      %v715 = vpop.permute.xlu0 %714
      %v716 = vsel %vm457, %v713, %v715
      %v719 = vsel %vm460, 0, %v713
      %721 = vrot.lane.b32.xlu0 %v697, 15
      %v722 = vpop.permute.xlu0 %721
      %723 = vrot.lane.b32.xlu0 %v698, 15
      %v724 = vpop.permute.xlu0 %723
      %v725 = vsel %vm468, %v722, %v724
      %v728 = vsel %vm471, 0, %v722
      %v730 = vsel %vm489, %v728, 0
      %v731 = vsel %vm490, %v725, 0
      %732 = vrot.lane.b32.xlu0 %v697, 1
      %v733 = vpop.permute.xlu0 %732
      %734 = vrot.lane.b32.xlu0 %v698, 1
      %v735 = vpop.permute.xlu0 %734
      %v736 = vsel %vm497, %v733, %v735
      %v739 = vsel %vm500, 0, %v733
      %v741 = vsel %vm449, %v739, 0
      %v742 = vsel %vm450, %v736, 0
      %743 = vrot.lane.b32.xlu0 %v697, 127
      %v744 = vpop.permute.xlu0 %743
      %745 = vrot.lane.b32.xlu0 %v698, 127
      %v746 = vpop.permute.xlu0 %745
      %v747 = vsel %vm510, %v744, %v746
      %v750 = vsel %vm513, %v746, 0
      %v752 = vsel %vm489, %v747, 0
      %v753 = vsel %vm490, %v750, 0
      %754 = vrot.lane.b32.xlu0 %v697, 113
      %v755 = vpop.permute.xlu0 %754
      %756 = vrot.lane.b32.xlu0 %v698, 113
      %v757 = vpop.permute.xlu0 %756
      %v758 = vsel %vm523, %v755, %v757
      %v761 = vsel %vm526, %v757, 0
      %v763 = vsel %vm449, %v758, 0
      %v764 = vsel %vm450, %v761, 0
      %765 = vrot.lane.b32.xlu0 %v697, 112
      %v766 = vpop.permute.xlu0 %765
      %767 = vrot.lane.b32.xlu0 %v698, 112
      %v768 = vpop.permute.xlu0 %767
      %v769 = vsel %vm536, %v766, %v768
      %v772 = vsel %vm539, %v768, 0
      %774 = vrot.lane.b32.xlu0 %v697, 111
      %v775 = vpop.permute.xlu0 %774
      %776 = vrot.lane.b32.xlu0 %v698, 111
      %v777 = vpop.permute.xlu0 %776
      %v778 = vsel %vm547, %v775, %v777
      %v781 = vsel %vm550, %v777, 0
      %v783 = vsel %vm489, %v778, 0
      %v784 = vsel %vm490, %v781, 0
      %v789 = vunpack.c.l.b16 %v374
      %v790 = vunpack.c.h.b16 %v374
      %v791 = vunpack.c.l.b16 %v375
      %v792 = vunpack.c.h.b16 %v375
      %v793 = vunpack.c.l.b16 %v376
      %v794 = vunpack.c.h.b16 %v376
      %v795 = vunpack.c.l.b16 %v377
      %v796 = vunpack.c.h.b16 %v377
      %v797 = vpack.c.b16 %v791, %v789
      %v798 = vpack.c.b16 %v792, %v790
      %v799 = vpack.c.b16 %v795, %v793
      %v800 = vpack.c.b16 %v796, %v794
      %v804 = vsel %vm460, %v798, 0
      %v807 = vsel %vm460, %v800, 0
      %809 = vmatprep.subr.bf16.mxu0 %v711
      %810 = vmatpush1.bf16.msra.mxu0 %v710
      %811 = vmatprep.subr.bf16.mxu0 %v716
      %812 = vmatpush1.bf16.msra.mxu0 %v719
      %813 = vmatprep.subr.bf16.mxu0 %v731
      %814 = vmatpush1.bf16.msra.mxu0 %v730
      %815 = vmatprep.subr.bf16.mxu0 %v742
      %816 = vmatpush1.bf16.msra.mxu0 %v741
      %817 = vmatprep.subr.bf16.mxu0 %v698
      %818 = vmatpush1.bf16.msra.mxu0 %v697
      %819 = vmatprep.subr.bf16.mxu0 %v753
      %820 = vmatpush1.bf16.msra.mxu0 %v752
      %821 = vmatprep.subr.bf16.mxu0 %v764
      %822 = vmatpush1.bf16.msra.mxu0 %v763
      %823 = vmatprep.subr.bf16.mxu0 %v772
      %824 = vmatpush1.bf16.msra.mxu0 %v769
      %825 = vmatprep.subr.bf16.mxu0 %v784
      %826 = vmatpush1.bf16.msra.mxu0 %v783
      %827 = vmatprep.subr.bf16.mxu0 0
      %828 = vmatpush1.bf16.msra.mxu0 0
      %829 = vmatprep.subr.bf16.mxu0 0
      %830 = vmatpush1.bf16.msra.mxu0 0
      %831 = vmatprep.subr.bf16.mxu0 0
      %832 = vmatpush1.bf16.msra.mxu0 0
      %833 = vmatprep.subr.bf16.mxu0 0
      %834 = vmatpush1.bf16.msra.mxu0 0
      %835 = vmatprep.subr.bf16.mxu0 0
      %836 = vmatpush1.bf16.msra.mxu0 0
      %837 = vmatprep.subr.bf16.mxu0 0
      %838 = vmatpush1.bf16.msra.mxu0 0
      %839 = vmatprep.subr.bf16.mxu0 0
      %840 = vmatpush1.bf16.msra.mxu0 0
      %841 = vmatprep.mubr.bf16.mxu0 %v804
      %842 = vmatmul.mubr.bf16.gmra.mrb[0].mxu0 %v797
      %v843 = vpop.f32.mrb[0].mxu0
      %v844 = vadd.f32 0.0, %v843
      %v845 = vpop.f32.mrb[0].mxu0
      %v846 = vadd.f32 0.0, %v845
      %v847 = vpop.f32.mrb[0].mxu0
      %v848 = vadd.f32 0.0, %v847
      %v849 = vpop.f32.mrb[0].mxu0
      %v850 = vadd.f32 0.0, %v849
      %851 = vmatprep.mubr.bf16.mxu0 %v807
      %852 = vmatmul.mubr.bf16.gmra.mrb[0].mxu0 %v799
      %v853 = vpop.f32.mrb[0].mxu0
      %v854 = vadd.f32 0.0, %v853
      %v855 = vpop.f32.mrb[0].mxu0
      %v856 = vadd.f32 0.0, %v855
      %v857 = vpop.f32.mrb[0].mxu0
      %v858 = vadd.f32 0.0, %v857
      %v859 = vpop.f32.mrb[0].mxu0
      %v860 = vadd.f32 0.0, %v859
      %861 = vdwg.mxu0
      %s863 = vtos %v696
      %v864 = vstv %s863
      %v866 = vmul.f32 %v864, %v844
      %v867 = vmul.f32 %v864, %v846
      %v868 = vmul.f32 %v864, %v848
      %v869 = vmul.f32 %v864, %v850
      %870 = vrot.lane.b32.xlu0 %v696, 127
      %v871 = vpop.permute.xlu0 %870
      %s872 = vtos %v871
      %v873 = vstv %s872
      %v875 = vmul.f32 %v873, %v854
      %v876 = vmul.f32 %v873, %v856
      %v877 = vmul.f32 %v873, %v858
      %v878 = vmul.f32 %v873, %v860
      %v879 = vadd.f32 %v866, %v875
      %v880 = vadd.f32 %v867, %v876
      %v881 = vadd.f32 %v868, %v877
      %v882 = vadd.f32 %v869, %v878
      %vm883 = vcmp.ge.f32.partialorder %v879, 0.0
      %vm884 = vcmp.ge.f32.partialorder %v880, 0.0
      %vm885 = vcmp.ge.f32.partialorder %v881, 0.0
      %vm886 = vcmp.ge.f32.partialorder %v882, 0.0
      %v887 = vmul.f32 %v879, 0.05
      %v888 = vmul.f32 %v880, 0.05
      %v889 = vmul.f32 %v881, 0.05
      %v890 = vmul.f32 %v882, 0.05
      %v891 = vsel %vm883, %v879, %v887
      %v892 = vsel %vm884, %v880, %v888
      %v893 = vsel %vm885, %v881, %v889
      %v894 = vsel %vm886, %v882, %v890
      %v895 = vadd.f32 %v891, %v892
      %896 = vadd.xlane.f32.xlu0 %v895
      %v897 = vpop.xlane.xlu0 %896
      %v898 = vadd.f32 %v893, %v894
      %899 = vadd.xlane.f32.xlu0 %v898
      %v900 = vpop.xlane.xlu0 %899
      %v901 = vmul.f32 %v897, %v394
      %v902 = vmul.f32 %v900, %v394
      %s903 = scalar_lea.vmem %s3, 32
      %v904 = vld [vmem:[%s903] sm:$0xff]
      %v905 = vld [vmem:[%s903 + $0x8] sm:$0xff]
      %v906 = vmul.f32 %v901, %v904
      %v907 = vmul.f32 %v902, %v905
      %v908 = vsel %vm401, %v906, 0.0
      %v909 = vsel %vm401, %v907, 0.0
      %v910 = vadd.f32 %v908, %v909
      %v911 = vrot.slane %v910, 4
      %v912 = vadd.f32 %v910, %v911
      %v913 = vrot.slane %v912, 2
      %v914 = vadd.f32 %v912, %v913
      %v915 = vrot.slane %v914, 1
      %v916 = vadd.f32 %v914, %v915
      %s917 = scalar_lea.vmem %s4, 2
      %v918 = vld [vmem:[%s917] sm:$0x1]
      %v919 = vadd.f32 %v916, %v918
      %v920 = vxor.u32 %v919, 2147483648
      %v921 = vmul.f32 %v920, 1.442695
      %v922 = vpow.pop %v921
      %v923 = vadd.f32 %v922, 1.0
      %v924 = vrcp.pop %v923
      %v925 = vmul.f32 1.0, %v924
      %v926 = vpack.c.bf16 %v893, %v891
      %v927 = vpack.c.bf16 %v894, %v892
      %930 = vrot.lane.b32.xlu0 %v926, 17
      %v931 = vpop.permute.xlu0 %930
      %932 = vrot.lane.b32.xlu0 %v927, 17
      %v933 = vpop.permute.xlu0 %932
      %v934 = vsel %vm427, %v931, %v933
      %v937 = vsel %vm430, 0, %v931
      %v939 = vsel %vm449, %v937, 0
      %v940 = vsel %vm450, %v934, 0
      %941 = vrot.lane.b32.xlu0 %v926, 16
      %v942 = vpop.permute.xlu0 %941
      %943 = vrot.lane.b32.xlu0 %v927, 16
      %v944 = vpop.permute.xlu0 %943
      %v945 = vsel %vm457, %v942, %v944
      %v948 = vsel %vm460, 0, %v942
      %950 = vrot.lane.b32.xlu0 %v926, 15
      %v951 = vpop.permute.xlu0 %950
      %952 = vrot.lane.b32.xlu0 %v927, 15
      %v953 = vpop.permute.xlu0 %952
      %v954 = vsel %vm468, %v951, %v953
      %v957 = vsel %vm471, 0, %v951
      %v959 = vsel %vm489, %v957, 0
      %v960 = vsel %vm490, %v954, 0
      %961 = vrot.lane.b32.xlu0 %v926, 1
      %v962 = vpop.permute.xlu0 %961
      %963 = vrot.lane.b32.xlu0 %v927, 1
      %v964 = vpop.permute.xlu0 %963
      %v965 = vsel %vm497, %v962, %v964
      %v968 = vsel %vm500, 0, %v962
      %v970 = vsel %vm449, %v968, 0
      %v971 = vsel %vm450, %v965, 0
      %972 = vrot.lane.b32.xlu0 %v926, 127
      %v973 = vpop.permute.xlu0 %972
      %974 = vrot.lane.b32.xlu0 %v927, 127
      %v975 = vpop.permute.xlu0 %974
      %v976 = vsel %vm510, %v973, %v975
      %v979 = vsel %vm513, %v975, 0
      %v981 = vsel %vm489, %v976, 0
      %v982 = vsel %vm490, %v979, 0
      %983 = vrot.lane.b32.xlu0 %v926, 113
      %v984 = vpop.permute.xlu0 %983
      %985 = vrot.lane.b32.xlu0 %v927, 113
      %v986 = vpop.permute.xlu0 %985
      %v987 = vsel %vm523, %v984, %v986
      %v990 = vsel %vm526, %v986, 0
      %v992 = vsel %vm449, %v987, 0
      %v993 = vsel %vm450, %v990, 0
      %994 = vrot.lane.b32.xlu0 %v926, 112
      %v995 = vpop.permute.xlu0 %994
      %996 = vrot.lane.b32.xlu0 %v927, 112
      %v997 = vpop.permute.xlu0 %996
      %v998 = vsel %vm536, %v995, %v997
      %v1001 = vsel %vm539, %v997, 0
      %1003 = vrot.lane.b32.xlu0 %v926, 111
      %v1004 = vpop.permute.xlu0 %1003
      %1005 = vrot.lane.b32.xlu0 %v927, 111
      %v1006 = vpop.permute.xlu0 %1005
      %v1007 = vsel %vm547, %v1004, %v1006
      %v1010 = vsel %vm550, %v1006, 0
      %v1012 = vsel %vm489, %v1007, 0
      %v1013 = vsel %vm490, %v1010, 0
      %v1018 = vunpack.c.l.b16 %v379
      %v1019 = vunpack.c.h.b16 %v379
      %v1020 = vunpack.c.l.b16 %v380
      %v1021 = vunpack.c.h.b16 %v380
      %v1022 = vunpack.c.l.b16 %v381
      %v1023 = vunpack.c.h.b16 %v381
      %v1024 = vunpack.c.l.b16 %v382
      %v1025 = vunpack.c.h.b16 %v382
      %v1026 = vpack.c.b16 %v1020, %v1018
      %v1027 = vpack.c.b16 %v1021, %v1019
      %v1028 = vpack.c.b16 %v1024, %v1022
      %v1029 = vpack.c.b16 %v1025, %v1023
      %v1033 = vsel %vm460, %v1027, 0
      %v1036 = vsel %vm460, %v1029, 0
      %1038 = vmatprep.subr.bf16.mxu0 %v940
      %1039 = vmatpush1.bf16.msra.mxu0 %v939
      %1040 = vmatprep.subr.bf16.mxu0 %v945
      %1041 = vmatpush1.bf16.msra.mxu0 %v948
      %1042 = vmatprep.subr.bf16.mxu0 %v960
      %1043 = vmatpush1.bf16.msra.mxu0 %v959
      %1044 = vmatprep.subr.bf16.mxu0 %v971
      %1045 = vmatpush1.bf16.msra.mxu0 %v970
      %1046 = vmatprep.subr.bf16.mxu0 %v927
      %1047 = vmatpush1.bf16.msra.mxu0 %v926
      %1048 = vmatprep.subr.bf16.mxu0 %v982
      %1049 = vmatpush1.bf16.msra.mxu0 %v981
      %1050 = vmatprep.subr.bf16.mxu0 %v993
      %1051 = vmatpush1.bf16.msra.mxu0 %v992
      %1052 = vmatprep.subr.bf16.mxu0 %v1001
      %1053 = vmatpush1.bf16.msra.mxu0 %v998
      %1054 = vmatprep.subr.bf16.mxu0 %v1013
      %1055 = vmatpush1.bf16.msra.mxu0 %v1012
      %1056 = vmatprep.subr.bf16.mxu0 0
      %1057 = vmatpush1.bf16.msra.mxu0 0
      %1058 = vmatprep.subr.bf16.mxu0 0
      %1059 = vmatpush1.bf16.msra.mxu0 0
      %1060 = vmatprep.subr.bf16.mxu0 0
      %1061 = vmatpush1.bf16.msra.mxu0 0
      %1062 = vmatprep.subr.bf16.mxu0 0
      %1063 = vmatpush1.bf16.msra.mxu0 0
      %1064 = vmatprep.subr.bf16.mxu0 0
      %1065 = vmatpush1.bf16.msra.mxu0 0
      %1066 = vmatprep.subr.bf16.mxu0 0
      %1067 = vmatpush1.bf16.msra.mxu0 0
      %1068 = vmatprep.subr.bf16.mxu0 0
      %1069 = vmatpush1.bf16.msra.mxu0 0
      %1070 = vmatprep.mubr.bf16.mxu0 %v1033
      %1071 = vmatmul.mubr.bf16.gmra.mrb[0].mxu0 %v1026
      %v1072 = vpop.f32.mrb[0].mxu0
      %v1073 = vadd.f32 0.0, %v1072
      %v1074 = vpop.f32.mrb[0].mxu0
      %v1075 = vadd.f32 0.0, %v1074
      %v1076 = vpop.f32.mrb[0].mxu0
      %v1077 = vadd.f32 0.0, %v1076
      %v1078 = vpop.f32.mrb[0].mxu0
      %v1079 = vadd.f32 0.0, %v1078
      %1080 = vmatprep.mubr.bf16.mxu0 %v1036
      %1081 = vmatmul.mubr.bf16.gmra.mrb[0].mxu0 %v1028
      %v1082 = vpop.f32.mrb[0].mxu0
      %v1083 = vadd.f32 0.0, %v1082
      %v1084 = vpop.f32.mrb[0].mxu0
      %v1085 = vadd.f32 0.0, %v1084
      %v1086 = vpop.f32.mrb[0].mxu0
      %v1087 = vadd.f32 0.0, %v1086
      %v1088 = vpop.f32.mrb[0].mxu0
      %v1089 = vadd.f32 0.0, %v1088
      %1090 = vdwg.mxu0
      %s1092 = vtos %v925
      %v1093 = vstv %s1092
      %v1095 = vmul.f32 %v1093, %v1073
      %v1096 = vmul.f32 %v1093, %v1075
      %v1097 = vmul.f32 %v1093, %v1077
      %v1098 = vmul.f32 %v1093, %v1079
      %1099 = vrot.lane.b32.xlu0 %v925, 127
      %v1100 = vpop.permute.xlu0 %1099
      %s1101 = vtos %v1100
      %v1102 = vstv %s1101
      %v1104 = vmul.f32 %v1102, %v1083
      %v1105 = vmul.f32 %v1102, %v1085
      %v1106 = vmul.f32 %v1102, %v1087
      %v1107 = vmul.f32 %v1102, %v1089
      %v1108 = vadd.f32 %v1095, %v1104
      %v1109 = vadd.f32 %v1096, %v1105
      %v1110 = vadd.f32 %v1097, %v1106
      %v1111 = vadd.f32 %v1098, %v1107
      %vm1112 = vcmp.ge.f32.partialorder %v1108, 0.0
      %vm1113 = vcmp.ge.f32.partialorder %v1109, 0.0
      %vm1114 = vcmp.ge.f32.partialorder %v1110, 0.0
      %vm1115 = vcmp.ge.f32.partialorder %v1111, 0.0
      %v1116 = vmul.f32 %v1108, 0.05
      %v1117 = vmul.f32 %v1109, 0.05
      %v1118 = vmul.f32 %v1110, 0.05
      %v1119 = vmul.f32 %v1111, 0.05
      %v1120 = vsel %vm1112, %v1108, %v1116
      %v1121 = vsel %vm1113, %v1109, %v1117
      %v1122 = vsel %vm1114, %v1110, %v1118
      %v1123 = vsel %vm1115, %v1111, %v1119
      %v1124 = vadd.f32 %v1120, %v1121
      %1125 = vadd.xlane.f32.xlu0 %v1124
      %v1126 = vpop.xlane.xlu0 %1125
      %v1127 = vadd.f32 %v1122, %v1123
      %1128 = vadd.xlane.f32.xlu0 %v1127
      %v1129 = vpop.xlane.xlu0 %1128
      %v1130 = vmul.f32 %v1126, %v394
      %v1131 = vmul.f32 %v1129, %v394
      %s1132 = scalar_lea.vmem %s3, 48
      %v1133 = vld [vmem:[%s1132] sm:$0xff]
      %v1134 = vld [vmem:[%s1132 + $0x8] sm:$0xff]
      %v1135 = vmul.f32 %v1130, %v1133
      %v1136 = vmul.f32 %v1131, %v1134
      %v1137 = vsel %vm401, %v1135, 0.0
      %v1138 = vsel %vm401, %v1136, 0.0
      %v1139 = vadd.f32 %v1137, %v1138
      %v1140 = vrot.slane %v1139, 4
      %v1141 = vadd.f32 %v1139, %v1140
      %v1142 = vrot.slane %v1141, 2
      %v1143 = vadd.f32 %v1141, %v1142
      %v1144 = vrot.slane %v1143, 1
      %v1145 = vadd.f32 %v1143, %v1144
      %s1146 = scalar_lea.vmem %s4, 3
      %v1147 = vld [vmem:[%s1146] sm:$0x1]
      %v1148 = vadd.f32 %v1145, %v1147
      %v1149 = vxor.u32 %v1148, 2147483648
      %v1150 = vmul.f32 %v1149, 1.442695
      %v1151 = vpow.pop %v1150
      %v1152 = vadd.f32 %v1151, 1.0
      %v1153 = vrcp.pop %v1152
      %v1154 = vmul.f32 1.0, %v1153
      %v1155 = vpack.c.bf16 %v1122, %v1120
      %v1156 = vpack.c.bf16 %v1123, %v1121
      %1159 = vrot.lane.b32.xlu0 %v1155, 17
      %v1160 = vpop.permute.xlu0 %1159
      %1161 = vrot.lane.b32.xlu0 %v1156, 17
      %v1162 = vpop.permute.xlu0 %1161
      %v1163 = vsel %vm427, %v1160, %v1162
      %v1166 = vsel %vm430, 0, %v1160
      %v1168 = vsel %vm449, %v1166, 0
      %v1169 = vsel %vm450, %v1163, 0
      %1170 = vrot.lane.b32.xlu0 %v1155, 16
      %v1171 = vpop.permute.xlu0 %1170
      %1172 = vrot.lane.b32.xlu0 %v1156, 16
      %v1173 = vpop.permute.xlu0 %1172
      %v1174 = vsel %vm457, %v1171, %v1173
      %v1177 = vsel %vm460, 0, %v1171
      %1179 = vrot.lane.b32.xlu0 %v1155, 15
      %v1180 = vpop.permute.xlu0 %1179
      %1181 = vrot.lane.b32.xlu0 %v1156, 15
      %v1182 = vpop.permute.xlu0 %1181
      %v1183 = vsel %vm468, %v1180, %v1182
      %v1186 = vsel %vm471, 0, %v1180
      %v1188 = vsel %vm489, %v1186, 0
      %v1189 = vsel %vm490, %v1183, 0
      %1190 = vrot.lane.b32.xlu0 %v1155, 1
      %v1191 = vpop.permute.xlu0 %1190
      %1192 = vrot.lane.b32.xlu0 %v1156, 1
      %v1193 = vpop.permute.xlu0 %1192
      %v1194 = vsel %vm497, %v1191, %v1193
      %v1197 = vsel %vm500, 0, %v1191
      %v1199 = vsel %vm449, %v1197, 0
      %v1200 = vsel %vm450, %v1194, 0
      %1201 = vrot.lane.b32.xlu0 %v1155, 127
      %v1202 = vpop.permute.xlu0 %1201
      %1203 = vrot.lane.b32.xlu0 %v1156, 127
      %v1204 = vpop.permute.xlu0 %1203
      %v1205 = vsel %vm510, %v1202, %v1204
      %v1208 = vsel %vm513, %v1204, 0
      %v1210 = vsel %vm489, %v1205, 0
      %v1211 = vsel %vm490, %v1208, 0
      %1212 = vrot.lane.b32.xlu0 %v1155, 113
      %v1213 = vpop.permute.xlu0 %1212
      %1214 = vrot.lane.b32.xlu0 %v1156, 113
      %v1215 = vpop.permute.xlu0 %1214
      %v1216 = vsel %vm523, %v1213, %v1215
      %v1219 = vsel %vm526, %v1215, 0
      %v1221 = vsel %vm449, %v1216, 0
      %v1222 = vsel %vm450, %v1219, 0
      %1223 = vrot.lane.b32.xlu0 %v1155, 112
      %v1224 = vpop.permute.xlu0 %1223
      %1225 = vrot.lane.b32.xlu0 %v1156, 112
      %v1226 = vpop.permute.xlu0 %1225
      %v1227 = vsel %vm536, %v1224, %v1226
      %v1230 = vsel %vm539, %v1226, 0
      %1232 = vrot.lane.b32.xlu0 %v1155, 111
      %v1233 = vpop.permute.xlu0 %1232
      %1234 = vrot.lane.b32.xlu0 %v1156, 111
      %v1235 = vpop.permute.xlu0 %1234
      %v1236 = vsel %vm547, %v1233, %v1235
      %v1239 = vsel %vm550, %v1235, 0
      %v1241 = vsel %vm489, %v1236, 0
      %v1242 = vsel %vm490, %v1239, 0
      %v1244 = vunpack.c.l.b16 %v383
      %v1245 = vunpack.c.h.b16 %v383
      %v1246 = vpack.c.b16 %v1244, %v1244
      %v1247 = vpack.c.b16 %v1245, %v1245
      %v1250 = vsel %vm460, %v1247, 0
      %1252 = vmatprep.subr.bf16.mxu0 %v1169
      %1253 = vmatpush1.bf16.msra.mxu0 %v1168
      %1254 = vmatprep.subr.bf16.mxu0 %v1174
      %1255 = vmatpush1.bf16.msra.mxu0 %v1177
      %1256 = vmatprep.subr.bf16.mxu0 %v1189
      %1257 = vmatpush1.bf16.msra.mxu0 %v1188
      %1258 = vmatprep.subr.bf16.mxu0 %v1200
      %1259 = vmatpush1.bf16.msra.mxu0 %v1199
      %1260 = vmatprep.subr.bf16.mxu0 %v1156
      %1261 = vmatpush1.bf16.msra.mxu0 %v1155
      %1262 = vmatprep.subr.bf16.mxu0 %v1211
      %1263 = vmatpush1.bf16.msra.mxu0 %v1210
      %1264 = vmatprep.subr.bf16.mxu0 %v1222
      %1265 = vmatpush1.bf16.msra.mxu0 %v1221
      %1266 = vmatprep.subr.bf16.mxu0 %v1230
      %1267 = vmatpush1.bf16.msra.mxu0 %v1227
      %1268 = vmatprep.subr.bf16.mxu0 %v1242
      %1269 = vmatpush1.bf16.msra.mxu0 %v1241
      %1270 = vmatprep.subr.bf16.mxu0 0
      %1271 = vmatpush1.bf16.msra.mxu0 0
      %1272 = vmatprep.subr.bf16.mxu0 0
      %1273 = vmatpush1.bf16.msra.mxu0 0
      %1274 = vmatprep.subr.bf16.mxu0 0
      %1275 = vmatpush1.bf16.msra.mxu0 0
      %1276 = vmatprep.subr.bf16.mxu0 0
      %1277 = vmatpush1.bf16.msra.mxu0 0
      %1278 = vmatprep.subr.bf16.mxu0 0
      %1279 = vmatpush1.bf16.msra.mxu0 0
      %1280 = vmatprep.subr.bf16.mxu0 0
      %1281 = vmatpush1.bf16.msra.mxu0 0
      %1282 = vmatprep.subr.bf16.mxu0 0
      %1283 = vmatpush1.bf16.msra.mxu0 0
      %1284 = vmatprep.mubr.bf16.mxu0 %v1250
      %1285 = vmatmul.mubr.bf16.gmra.mrb[0].mxu0 %v1246
      %v1286 = vpop.f32.mrb[0].mxu0
      %v1287 = vadd.f32 0.0, %v1286
      %v1288 = vpop.f32.mrb[0].mxu0
      %v1289 = vadd.f32 0.0, %v1288
      %v1290 = vpop.f32.mrb[0].mxu0
      %v1291 = vpop.f32.mrb[0].mxu0
      %1292 = vdwg.mxu0
      %s1294 = vtos %v1154
      %v1295 = vstv %s1294
      %v1297 = vmul.f32 %v1295, %v1287
      %v1298 = vmul.f32 %v1295, %v1289
      %1299 = vrot.lane.b32.xlu0 %v1154, 127
      %v1300 = vpop.permute.xlu0 %1299
      %s1301 = vtos %v1300
      %v1302 = vstv %s1301
      %v1304 = vmul.f32 %v1302, %v1287
      %v1305 = vmul.f32 %v1302, %v1289
      %v1308 = vrot.slane %v1304, 4
      %v1309 = vrot.slane %v1305, 4
      %v1312 = vadd.f32 %v1297, %v1308
      %v1313 = vadd.f32 %v1298, %v1309
      %v1316 = vrot.slane %v891, 4
      %v1317 = vrot.slane %v892, 4
      %v1322 = vrot.slane %v1312, 4
      %v1323 = vrot.slane %v1313, 4
      %vm1326 = vcmask 1043456
      %v1327 = vsel %vm1326, %v662, %v1316
      %v1328 = vsel %vm1326, %v663, %v1317
      %v1329 = vsel %vm1326, %v1120, %v1322
      %v1330 = vsel %vm1326, %v1121, %v1323
      %v1331 = vadd.f32 %v1327, %v1328
      %1332 = vadd.xlane.f32.xlu0 %v1331
      %v1333 = vpop.xlane.xlu0 %1332
      %v1334 = vadd.f32 %v1329, %v1330
      %1335 = vadd.xlane.f32.xlu0 %v1334
      %v1336 = vpop.xlane.xlu0 %1335
      %v1337 = vmul.f32 %v1333, %v394
      %v1338 = vmul.f32 %v1336, %v394
      %v1339 = vsub.f32 %v1327, %v1337
      %v1340 = vsub.f32 %v1328, %v1337
      %v1341 = vsub.f32 %v1329, %v1338
      %v1342 = vsub.f32 %v1330, %v1338
      %v1343 = vmul.f32 %v1339, %v1339
      %v1344 = vmul.f32 %v1340, %v1340
      %v1345 = vmul.f32 %v1341, %v1341
      %v1346 = vmul.f32 %v1342, %v1342
      %v1347 = vadd.f32 %v1343, %v1344
      %1348 = vadd.xlane.f32.xlu0 %v1347
      %v1349 = vpop.xlane.xlu0 %1348
      %v1350 = vadd.f32 %v1345, %v1346
      %1351 = vadd.xlane.f32.xlu0 %v1350
      %v1352 = vpop.xlane.xlu0 %1351
      %v1353 = vmul.f32 %v1349, %v394
      %v1354 = vmul.f32 %v1352, %v394
      %v1355 = vrsqrt.pop %v1353
      %v1356 = vmul.f32 %v1353, %v1355
      %vm1357 = vcmp.eq.f32.partialorder %v1353, inf
      %v1358 = vsel %vm1357, %v1353, %v1356
      %vm1359 = vcmp.eq.f32.partialorder %v1353, 0.0
      %v1360 = vand.u32 %v1353, 2147483648
      %v1361 = vsel %vm1359, %v1360, %v1358
      %v1362 = vrsqrt.pop %v1354
      %v1363 = vmul.f32 %v1354, %v1362
      %vm1364 = vcmp.eq.f32.partialorder %v1354, inf
      %v1365 = vsel %vm1364, %v1354, %v1363
      %vm1366 = vcmp.eq.f32.partialorder %v1354, 0.0
      %v1367 = vand.u32 %v1354, 2147483648
      %v1368 = vsel %vm1366, %v1367, %v1365
      %v1369 = vadd.f32 %v1361, %v1337
      %v1370 = vadd.f32 %v1368, %v1338
      %v1371 = vld [vmem:[%s5] sm:$0xff]
      %v1372 = vld [vmem:[%s5 + $0x8] sm:$0xff]
      %v1373 = vmul.f32 %v1369, %v1371
      %v1374 = vmul.f32 %v1370, %v1372
      %v1375 = vsel %vm500, %v1373, 0.0
      %v1376 = vsel %vm500, %v1374, 0.0
      %v1377 = vadd.f32 %v1375, %v1376
      %v1378 = vrot.slane %v1377, 4
      %v1379 = vadd.f32 %v1377, %v1378
      %v1380 = vrot.slane %v1379, 2
      %v1381 = vadd.f32 %v1379, %v1380
      %v1382 = vrot.slane %v1381, 1
      %v1383 = vadd.f32 %v1381, %v1382
      %v1384 = vld [vmem:[#allocation2] sm:$0x1]
      %v1385 = vadd.f32 %v1383, %v1384
      %v1386 = vmax.f32 %v1385, 0.0
      %v1387 = vld [vmem:[%s7] sm:$0xff]
      %v1388 = vld [vmem:[%s7 + $0x8] sm:$0xff]
      %v1389 = vlaneseq
      %v1390 = vshrl.u32 %v1389, 7
      %v1391 = vsub.s32 0, %v1390
      %v1392 = vrot.slane %v1386, %v1391
      %v1393 = vmul.f32 %v1387, %v1392
      %v1394 = vmul.f32 %v1388, %v1392
      %v1395 = vadd.f32 %v1393, 0.0
      %v1396 = vadd.f32 %v1394, 0.0
      %v1397 = vld [vmem:[%s8] sm:$0xff]
      %v1398 = vld [vmem:[%s8 + $0x8] sm:$0xff]
      %v1399 = vadd.f32 %v1395, %v1397
      %v1400 = vadd.f32 %v1396, %v1398
      %v1401 = vxor.u32 %v1399, 2147483648
      %v1402 = vxor.u32 %v1400, 2147483648
      %v1403 = vmul.f32 %v1401, 1.442695
      %v1404 = vpow.pop %v1403
      %v1405 = vmul.f32 %v1402, 1.442695
      %v1406 = vpow.pop %v1405
      %v1407 = vadd.f32 %v1404, 1.0
      %v1408 = vadd.f32 %v1406, 1.0
      %v1409 = vrcp.pop %v1407
      %v1410 = vmul.f32 1.0, %v1409
      %v1411 = vrcp.pop %v1408
      %v1412 = vmul.f32 1.0, %v1411
      %1414 = vset.pattern.permute.xlu0 0
      %1415 = vperm.xlu0 %1414, %v1410
      %v1416 = vpop.permute.xlu0 %1415
      %1419 = vset.pattern.permute.xlu0 0
      %1420 = vperm.xlu0 %1419, %v1412
      %v1421 = vpop.permute.xlu0 %1420
      %v1423 = vmul.f32 %v1327, %v1416
      %v1424 = vmul.f32 %v1328, %v1416
      %v1425 = vmul.f32 %v1329, %v1421
      %v1426 = vmul.f32 %v1330, %v1421
      %v1427 = vadd.f32 %v1423, %v384
      %v1428 = vadd.f32 %v1424, %v385
      %v1429 = vadd.f32 %v1425, %v386
      %v1430 = vadd.f32 %v1426, %v387
      %1431 = vst [vmem:[%s334] sm:$0xff] %v1427
      %1432 = vst [vmem:[%s334 + $0x8] sm:$0xff] %v1428
      %1433 = vst [vmem:[%s334 + $0x10] sm:$0xff] %v1429
      %1434 = vst [vmem:[%s334 + $0x18] sm:$0xff] %v1430
      %p1435 = scmp.lt.s32.totalorder %s22, 1
      %s1436 = scalar_select %p1435, %s22, 1
      %s1437 = smul.addr %s1436, 4
      %s1438 = smul.addr %s1437, 8
      %s1439 = scalar_lea.vmem %s9, %s1438
      // Predicated region
      $region57: #{crf_forward.1} parent=55 // pred_check
        %p1440 = pneg %p234
      $region58: #{crf_forward.1} parent=55 // pred_check_branch
        %1442 = sbr.rel (%p1440) target = $region60
      $region59: #{crf_forward.1} parent=55 // pred_region
        _
      $region60: #{crf_forward.1} parent=55 // pred_fallthru
        _
    $region56: #{crf_forward.1} parent=5 // pred_fallthru
      _
    %p1443 = scmp.le.s32.totalorder 2, %s17
    // Predicated region
    $region61: #{crf_forward.1} parent=5 // pred_check
      %p1444 = pneg %p1443
    $region62: #{crf_forward.1} parent=5 // pred_check_branch
      %1446 = sbr.rel (%p1444) target = $region64
    $region63: #{crf_forward.1} parent=5 // pred_region
      %s1447 = ssub.s32 %s17, 2
      // Predicated region
      $region65: #{crf_forward.1} parent=63 // pred_check
        %p1448 = pneg %p240
      $region66: #{crf_forward.1} parent=63 // pred_check_branch
        %1450 = sbr.rel (%p1448) target = $region68
      $region67: #{crf_forward.1} parent=63 // pred_region
        %p1451 = scmp.lt.s32.totalorder %s23, 1
        %s1452 = scalar_select %p1451, %s23, 1
        %s1453 = smul.addr %s1452, 4
        %s1454 = smul.addr %s1453, 8
        %s1455 = scalar_lea.vmem %s9, %s1454
      $region68: #{crf_forward.1} parent=63 // pred_fallthru
        _
    $region64: #{crf_forward.1} parent=5 // pred_fallthru
      _
  $region6: #{crf_forward.1} parent=0 // loop_footer
    %s21 = sadd.s32 1, %s17
  $region7: #{crf_forward.1} parent=0 // loop_footer_branch
    %16 = sbr.rel target = $region3
  $region8: #{crf_forward.1} parent=0 // loop_exit
    _

</llo_original>
